<compile_context>
chip_gen: v6e
topology: v6e:2x2x1
jax: 0.10.0
libtpu: 0.0.40
codegen_flags: <defaults>
</compile_context>

<pallas_src>
import jax
import jax.numpy as jnp
from jax import lax
from jax.experimental import pallas as pl
from jax.experimental.pallas import tpu as pltpu


def _round_up(x, m):
    return (x + m - 1) // m * m


# ----------------------------------------------------------------------------
# Fused encoder kernel
# ----------------------------------------------------------------------------
def _make_encoder_kernel(n_layers, T, B, E, H, V_pad):
    """Build the fused encoder kernel; all sizes are static Python ints."""
    TB = T * B

    def kernel(*refs):
        src_ref = refs[0]                        # (T*B, 1) int32, VMEM
        emb_ref = refs[1]                        # (V_pad, E) f32, VMEM
        w_refs = refs[2:2 + 3 * n_layers]        # per layer: w_ih, w_hh, bias
        h_out_ref = refs[2 + 3 * n_layers]       # (n_layers, B, H)
        c_out_ref = refs[3 + 3 * n_layers]       # (n_layers, B, H)
        seq_sc = refs[4 + 3 * n_layers]          # (T*B, H) inter-layer seq

        # ---- Embedding gather as one one-hot MXU matmul --------------------
        # (dropout == identity in eval mode). Padded vocab rows never match a
        # token id, so they contribute exact zeros.
        tok = src_ref[...]                                        # (TB, 1)
        col = lax.broadcasted_iota(jnp.int32, (TB, V_pad), 1)
        onehot = jnp.where(col == tok, 1.0, 0.0)                  # (TB, V_pad)
        x_in = jnp.dot(onehot, emb_ref[...],
                       preferred_element_type=jnp.float32)        # (TB, E)

        # ---- LSTM stack -----------------------------------------------------
        for layer in range(n_layers):
            w_ih = w_refs[3 * layer][...]        # (in_dim, 4H), cols [i,f,o,g]
            w_hh = w_refs[3 * layer + 1][...]    # (H, 4H)
            bias = w_refs[3 * layer + 2][...]    # (1, 4H)

            if layer > 0:
                x_in = seq_sc[...]               # (TB, H) from previous layer

            # Hoisted, non-recurrent input projection: one MXU matmul with
            # M = T*B, merged bias folded in once per layer.
            xproj = (jnp.dot(x_in, w_ih, preferred_element_type=jnp.float32)
                     + bias)                                      # (TB, 4H)

            h = jnp.zeros((B, H), jnp.float32)
            c = jnp.zeros((B, H), jnp.float32)

            # Fully unrolled time loop: only h @ W_hh is on the recurrent
            # critical path; every slice offset is a compile-time constant.
            for t in range(T):
                gates = xproj[t * B:(t + 1) * B, :] + jnp.dot(
                    h, w_hh, preferred_element_type=jnp.float32)   # (B, 4H)
                sig = jax.nn.sigmoid(gates[:, :3 * H])   # [i | f | o] at once
                i_g = sig[:, 0 * H:1 * H]
                f_g = sig[:, 1 * H:2 * H]
                o_g = sig[:, 2 * H:3 * H]
                g_g = jnp.tanh(gates[:, 3 * H:])
                c = f_g * c + i_g * g_g
                h = o_g * jnp.tanh(c)
                if layer + 1 < n_layers:        # last layer's sequence unused
                    seq_sc[pl.ds(t * B, B), :] = h

            # Final states written exactly once per layer, after the loop.
            h_out_ref[layer, :, :] = h
            c_out_ref[layer, :, :] = c

    return kernel


def encoder_forward_pallas(packed, src):
    """packed: output of pack_params_for_kernel(); src: (T, B) int32.

    Returns (hidden, cell), each (n_layers, B, H) float32.
    """
    T, B = src.shape
    emb = packed["embedding"]                     # (V, E)
    V, E = emb.shape
    layers = packed["layers"]
    n_layers = len(layers)
    H = layers[0]["w_hh"].shape[0]

    # Sublane-align the vocab axis; padded rows are zero and never selected.
    V_pad = _round_up(V, 8)
    if V_pad != V:
        emb = jnp.pad(emb, ((0, V_pad - V), (0, 0)))

    flat_w = []
    for lyr in layers:
        flat_w += [lyr["w_ih"], lyr["w_hh"], lyr["b"]]

    kernel = _make_encoder_kernel(n_layers, T, B, E, H, V_pad)
    vmem = pl.BlockSpec(memory_space=pltpu.MemorySpace.VMEM)

    src_flat = src.reshape(T * B, 1).astype(jnp.int32)   # row t*B + b

    hidden, cell = pl.pallas_call(
        kernel,
        out_shape=(jax.ShapeDtypeStruct((n_layers, B, H), jnp.float32),
                   jax.ShapeDtypeStruct((n_layers, B, H), jnp.float32)),
        in_specs=[vmem, vmem] + [vmem] * (3 * n_layers),
        out_specs=(vmem, vmem),
        scratch_shapes=[
            pltpu.VMEM((T * B, H), jnp.float32),   # inter-layer hidden seq
        ],
    )(src_flat, emb, *flat_w)
    return hidden, cell


# ----------------------------------------------------------------------------
# Parameter construction (PyTorch conventions) + kernel packing
# ----------------------------------------------------------------------------
def init_encoder_params(key, input_dim, emb_dim, hid_dim, n_layers):
    """PyTorch-convention params: weight_ih (4H, in), gate row order [i,f,g,o]."""
    keys = jax.random.split(key, 1 + 4 * n_layers)
    emb = jax.random.normal(keys[0], (input_dim, emb_dim), jnp.float32)
    bound = 1.0 / float(hid_dim) ** 0.5
    layers = []
    for l in range(n_layers):
        k_ih, k_hh, k_bih, k_bhh = keys[1 + 4 * l: 1 + 4 * (l + 1)]
        in_dim = emb_dim if l == 0 else hid_dim
        layers.append({
            "weight_ih": jax.random.uniform(k_ih, (4 * hid_dim, in_dim),
                                            jnp.float32, -bound, bound),
            "weight_hh": jax.random.uniform(k_hh, (4 * hid_dim, hid_dim),
                                            jnp.float32, -bound, bound),
            "bias_ih": jax.random.uniform(k_bih, (4 * hid_dim,),
                                          jnp.float32, -bound, bound),
            "bias_hh": jax.random.uniform(k_bhh, (4 * hid_dim,),
                                          jnp.float32, -bound, bound),
        })
    return {"embedding": emb, "layers": layers}


def _reorder_gate_cols(w, H):
    """Permute gate columns from PyTorch order [i, f, g, o] to [i, f, o, g]."""
    return jnp.concatenate(
        [w[:, 0 * H:1 * H], w[:, 1 * H:2 * H],
         w[:, 3 * H:4 * H], w[:, 2 * H:3 * H]], axis=1)


def pack_params_for_kernel(params):
    """Transpose weights to (in, 4H), merge biases, permute gates to [i,f,o,g]."""
    H = params["layers"][0]["weight_hh"].shape[1]
    packed_layers = []
    for lyr in params["layers"]:
        packed_layers.append({
            "w_ih": _reorder_gate_cols(lyr["weight_ih"].T, H),
            "w_hh": _reorder_gate_cols(lyr["weight_hh"].T, H),
            "b": _reorder_gate_cols(
                (lyr["bias_ih"] + lyr["bias_hh"])[None, :], H),
        })
    return {"embedding": params["embedding"], "layers": packed_layers}


# ----------------------------------------------------------------------------
# Pure-JAX reference (lax.scan LSTM, PyTorch gate order) for correctness check
# ----------------------------------------------------------------------------
def _reference_forward(params, src):
    x = jnp.take(params["embedding"], src, axis=0)       # (T, B, E)
    h_list, c_list = [], []
    for lyr in params["layers"]:
        H = lyr["weight_hh"].shape[1]
        B = x.shape[1]
        w_ih_t, w_hh_t = lyr["weight_ih"].T, lyr["weight_hh"].T
        b = lyr["bias_ih"] + lyr["bias_hh"]

        def step(carry, x_t, w_ih_t=w_ih_t, w_hh_t=w_hh_t, b=b, H=H):
            h, c = carry
            gates = x_t @ w_ih_t + h @ w_hh_t + b
            i = jax.nn.sigmoid(gates[:, 0 * H:1 * H])
            f = jax.nn.sigmoid(gates[:, 1 * H:2 * H])
            g = jnp.tanh(gates[:, 2 * H:3 * H])
            o = jax.nn.sigmoid(gates[:, 3 * H:4 * H])
            c_new = f * c + i * g
            h_new = o * jnp.tanh(c_new)
            return (h_new, c_new), h_new

        init = (jnp.zeros((B, H), jnp.float32), jnp.zeros((B, H), jnp.float32))
        (h_f, c_f), seq = jax.lax.scan(step, init, x)
        x = seq
        h_list.append(h_f)
        c_list.append(c_f)
    return jnp.stack(h_list, 0), jnp.stack(c_list, 0)


# ----------------------------------------------------------------------------
if __name__ == "__main__":
    # Small shapes consistent with the module: vocab=50, emb=32, hid=32,
    # n_layers=2, seq_len=8, batch=2.
    INPUT_DIM, EMB_DIM, HID_DIM, N_LAYERS = 50, 32, 32, 2
    T, B = 8, 2

    key = jax.random.PRNGKey(0)
    k_params, k_src = jax.random.split(key)
    params = init_encoder_params(k_params, INPUT_DIM, EMB_DIM, HID_DIM,
                                 N_LAYERS)
    src = jax.random.randint(k_src, (T, B), 0, INPUT_DIM, dtype=jnp.int32)

    packed = pack_params_for_kernel(params)
    hidden, cell = jax.jit(encoder_forward_pallas)(packed, src)
    jax.block_until_ready((hidden, cell))

    h_ref, c_ref = _reference_forward(params, src)
    assert hidden.shape == (N_LAYERS, B, HID_DIM)
    assert cell.shape == (N_LAYERS, B, HID_DIM)
    assert jnp.allclose(hidden, h_ref, atol=1e-5, rtol=1e-5)
    assert jnp.allclose(cell, c_ref, atol=1e-5, rtol=1e-5)

    print("KERNEL_OK")
</pallas_src>

<mosaic_0001>
module attributes {stable_mosaic.version = 11 : i64} {
  func.func @kernel(%arg0: memref<16x1xi32, #tpu.memory_space<vmem>>, %arg1: memref<56x32xf32, #tpu.memory_space<vmem>>, %arg2: memref<32x128xf32, #tpu.memory_space<vmem>>, %arg3: memref<32x128xf32, #tpu.memory_space<vmem>>, %arg4: memref<1x128xf32, #tpu.memory_space<vmem>>, %arg5: memref<32x128xf32, #tpu.memory_space<vmem>>, %arg6: memref<32x128xf32, #tpu.memory_space<vmem>>, %arg7: memref<1x128xf32, #tpu.memory_space<vmem>>, %arg8: memref<2x2x32xf32, #tpu.memory_space<vmem>>, %arg9: memref<2x2x32xf32, #tpu.memory_space<vmem>>, %arg10: memref<16x32xf32, #tpu.memory_space<vmem>>) attributes {dimension_semantics = [], scalar_prefetch = 0 : i64, scratch_operands = 1 : i64, tpu.core_type = #tpu.core_type<tc>} {
    %c0 = arith.constant 0 : index
    %c0_0 = arith.constant 0 : index
    %0 = vector.load %arg0[%c0, %c0_0] : memref<16x1xi32, #tpu.memory_space<vmem>>, vector<16x1xi32>
    %1 = tpu.iota {dimensions = array<i32: 1>} : vector<16x56xi32>
    %2 = vector.broadcast %0 : vector<16x1xi32> to vector<16x56xi32>
    %3 = arith.cmpi eq, %1, %2 : vector<16x56xi32>
    %cst = arith.constant 1.000000e+00 : f32
    %cst_1 = arith.constant 0.000000e+00 : f32
    %4 = vector.broadcast %cst : f32 to vector<16x56xf32>
    %5 = vector.broadcast %cst_1 : f32 to vector<16x56xf32>
    %6 = arith.select %3, %4, %5 : vector<16x56xi1>, vector<16x56xf32>
    %c0_2 = arith.constant 0 : index
    %c0_3 = arith.constant 0 : index
    %7 = vector.load %arg1[%c0_2, %c0_3] : memref<56x32xf32, #tpu.memory_space<vmem>>, vector<56x32xf32>
    %cst_4 = arith.constant dense<0.000000e+00> : vector<16x32xf32>
    %8 = tpu.matmul %6, %7, %cst_4 {dimension_numbers = #tpu.dot_dimension_numbers<[1], [0], [0], [1], [0, 0, 1, 1], [], []>} : vector<16x56xf32>, vector<56x32xf32>, vector<16x32xf32> -> vector<16x32xf32>
    %c0_5 = arith.constant 0 : index
    %c0_6 = arith.constant 0 : index
    %9 = vector.load %arg2[%c0_5, %c0_6] : memref<32x128xf32, #tpu.memory_space<vmem>>, vector<32x128xf32>
    %c0_7 = arith.constant 0 : index
    %c0_8 = arith.constant 0 : index
    %10 = vector.load %arg3[%c0_7, %c0_8] : memref<32x128xf32, #tpu.memory_space<vmem>>, vector<32x128xf32>
    %c0_9 = arith.constant 0 : index
    %c0_10 = arith.constant 0 : index
    %11 = vector.load %arg4[%c0_9, %c0_10] : memref<1x128xf32, #tpu.memory_space<vmem>>, vector<1x128xf32>
    %cst_11 = arith.constant dense<0.000000e+00> : vector<16x128xf32>
    %12 = tpu.matmul %8, %9, %cst_11 {dimension_numbers = #tpu.dot_dimension_numbers<[1], [0], [0], [1], [0, 0, 1, 1], [], []>} : vector<16x32xf32>, vector<32x128xf32>, vector<16x128xf32> -> vector<16x128xf32>
    %13 = vector.broadcast %11 : vector<1x128xf32> to vector<16x128xf32>
    %14 = arith.addf %12, %13 : vector<16x128xf32>
    %cst_12 = arith.constant 0.000000e+00 : f32
    %15 = vector.broadcast %cst_12 : f32 to vector<2x32xf32>
    %cst_13 = arith.constant 0.000000e+00 : f32
    %16 = vector.broadcast %cst_13 : f32 to vector<2x32xf32>
    %17 = vector.extract_strided_slice %14 {offsets = [0, 0], sizes = [2, 128], strides = [1, 1]} : vector<16x128xf32> to vector<2x128xf32>
    %cst_14 = arith.constant dense<0.000000e+00> : vector<2x128xf32>
    %18 = tpu.matmul %15, %10, %cst_14 {dimension_numbers = #tpu.dot_dimension_numbers<[1], [0], [0], [1], [0, 0, 1, 1], [], []>} : vector<2x32xf32>, vector<32x128xf32>, vector<2x128xf32> -> vector<2x128xf32>
    %19 = arith.addf %17, %18 : vector<2x128xf32>
    %20 = vector.extract_strided_slice %19 {offsets = [0, 0], sizes = [2, 96], strides = [1, 1]} : vector<2x128xf32> to vector<2x96xf32>
    %21 = arith.negf %20 : vector<2x96xf32>
    %22 = math.exp %21 : vector<2x96xf32>
    %cst_15 = arith.constant 1.000000e+00 : f32
    %23 = vector.broadcast %cst_15 : f32 to vector<2x96xf32>
    %24 = arith.addf %23, %22 : vector<2x96xf32>
    %25 = arith.divf %23, %24 : vector<2x96xf32>
    %26 = vector.extract_strided_slice %25 {offsets = [0, 0], sizes = [2, 32], strides = [1, 1]} : vector<2x96xf32> to vector<2x32xf32>
    %27 = vector.extract_strided_slice %25 {offsets = [0, 32], sizes = [2, 32], strides = [1, 1]} : vector<2x96xf32> to vector<2x32xf32>
    %28 = vector.extract_strided_slice %25 {offsets = [0, 64], sizes = [2, 32], strides = [1, 1]} : vector<2x96xf32> to vector<2x32xf32>
    %29 = vector.extract_strided_slice %19 {offsets = [0, 96], sizes = [2, 32], strides = [1, 1]} : vector<2x128xf32> to vector<2x32xf32>
    %30 = math.tanh %29 : vector<2x32xf32>
    %31 = arith.mulf %27, %16 : vector<2x32xf32>
    %32 = arith.mulf %26, %30 : vector<2x32xf32>
    %33 = arith.addf %31, %32 : vector<2x32xf32>
    %34 = math.tanh %33 : vector<2x32xf32>
    %35 = arith.mulf %28, %34 : vector<2x32xf32>
    %c0_16 = arith.constant 0 : index
    %c0_17 = arith.constant 0 : index
    %36 = vector.load %arg10[%c0_16, %c0_17] : memref<16x32xf32, #tpu.memory_space<vmem>>, vector<2x32xf32>
    tpu.vector_store %arg10[%c0_16, %c0_17], %35 {strides = array<i32>} : memref<16x32xf32, #tpu.memory_space<vmem>>, vector<2x32xf32>,
    %37 = vector.extract_strided_slice %14 {offsets = [2, 0], sizes = [2, 128], strides = [1, 1]} : vector<16x128xf32> to vector<2x128xf32>
    %cst_18 = arith.constant dense<0.000000e+00> : vector<2x128xf32>
    %38 = tpu.matmul %35, %10, %cst_18 {dimension_numbers = #tpu.dot_dimension_numbers<[1], [0], [0], [1], [0, 0, 1, 1], [], []>} : vector<2x32xf32>, vector<32x128xf32>, vector<2x128xf32> -> vector<2x128xf32>
    %39 = arith.addf %37, %38 : vector<2x128xf32>
    %40 = vector.extract_strided_slice %39 {offsets = [0, 0], sizes = [2, 96], strides = [1, 1]} : vector<2x128xf32> to vector<2x96xf32>
    %41 = arith.negf %40 : vector<2x96xf32>
    %42 = math.exp %41 : vector<2x96xf32>
    %cst_19 = arith.constant 1.000000e+00 : f32
    %43 = vector.broadcast %cst_19 : f32 to vector<2x96xf32>
    %44 = arith.addf %43, %42 : vector<2x96xf32>
    %45 = arith.divf %43, %44 : vector<2x96xf32>
    %46 = vector.extract_strided_slice %45 {offsets = [0, 0], sizes = [2, 32], strides = [1, 1]} : vector<2x96xf32> to vector<2x32xf32>
    %47 = vector.extract_strided_slice %45 {offsets = [0, 32], sizes = [2, 32], strides = [1, 1]} : vector<2x96xf32> to vector<2x32xf32>
    %48 = vector.extract_strided_slice %45 {offsets = [0, 64], sizes = [2, 32], strides = [1, 1]} : vector<2x96xf32> to vector<2x32xf32>
    %49 = vector.extract_strided_slice %39 {offsets = [0, 96], sizes = [2, 32], strides = [1, 1]} : vector<2x128xf32> to vector<2x32xf32>
    %50 = math.tanh %49 : vector<2x32xf32>
    %51 = arith.mulf %47, %33 : vector<2x32xf32>
    %52 = arith.mulf %46, %50 : vector<2x32xf32>
    %53 = arith.addf %51, %52 : vector<2x32xf32>
    %54 = math.tanh %53 : vector<2x32xf32>
    %55 = arith.mulf %48, %54 : vector<2x32xf32>
    %c2 = arith.constant 2 : index
    %c0_20 = arith.constant 0 : index
    %56 = vector.load %arg10[%c2, %c0_20] : memref<16x32xf32, #tpu.memory_space<vmem>>, vector<2x32xf32>
    tpu.vector_store %arg10[%c2, %c0_20], %55 {strides = array<i32>} : memref<16x32xf32, #tpu.memory_space<vmem>>, vector<2x32xf32>,
    %57 = vector.extract_strided_slice %14 {offsets = [4, 0], sizes = [2, 128], strides = [1, 1]} : vector<16x128xf32> to vector<2x128xf32>
    %cst_21 = arith.constant dense<0.000000e+00> : vector<2x128xf32>
    %58 = tpu.matmul %55, %10, %cst_21 {dimension_numbers = #tpu.dot_dimension_numbers<[1], [0], [0], [1], [0, 0, 1, 1], [], []>} : vector<2x32xf32>, vector<32x128xf32>, vector<2x128xf32> -> vector<2x128xf32>
    %59 = arith.addf %57, %58 : vector<2x128xf32>
    %60 = vector.extract_strided_slice %59 {offsets = [0, 0], sizes = [2, 96], strides = [1, 1]} : vector<2x128xf32> to vector<2x96xf32>
    %61 = arith.negf %60 : vector<2x96xf32>
    %62 = math.exp %61 : vector<2x96xf32>
    %cst_22 = arith.constant 1.000000e+00 : f32
    %63 = vector.broadcast %cst_22 : f32 to vector<2x96xf32>
    %64 = arith.addf %63, %62 : vector<2x96xf32>
    %65 = arith.divf %63, %64 : vector<2x96xf32>
    %66 = vector.extract_strided_slice %65 {offsets = [0, 0], sizes = [2, 32], strides = [1, 1]} : vector<2x96xf32> to vector<2x32xf32>
    %67 = vector.extract_strided_slice %65 {offsets = [0, 32], sizes = [2, 32], strides = [1, 1]} : vector<2x96xf32> to vector<2x32xf32>
    %68 = vector.extract_strided_slice %65 {offsets = [0, 64], sizes = [2, 32], strides = [1, 1]} : vector<2x96xf32> to vector<2x32xf32>
    %69 = vector.extract_strided_slice %59 {offsets = [0, 96], sizes = [2, 32], strides = [1, 1]} : vector<2x128xf32> to vector<2x32xf32>
    %70 = math.tanh %69 : vector<2x32xf32>
    %71 = arith.mulf %67, %53 : vector<2x32xf32>
    %72 = arith.mulf %66, %70 : vector<2x32xf32>
    %73 = arith.addf %71, %72 : vector<2x32xf32>
    %74 = math.tanh %73 : vector<2x32xf32>
    %75 = arith.mulf %68, %74 : vector<2x32xf32>
    %c4 = arith.constant 4 : index
    %c0_23 = arith.constant 0 : index
    %76 = vector.load %arg10[%c4, %c0_23] : memref<16x32xf32, #tpu.memory_space<vmem>>, vector<2x32xf32>
    tpu.vector_store %arg10[%c4, %c0_23], %75 {strides = array<i32>} : memref<16x32xf32, #tpu.memory_space<vmem>>, vector<2x32xf32>,
    %77 = vector.extract_strided_slice %14 {offsets = [6, 0], sizes = [2, 128], strides = [1, 1]} : vector<16x128xf32> to vector<2x128xf32>
    %cst_24 = arith.constant dense<0.000000e+00> : vector<2x128xf32>
    %78 = tpu.matmul %75, %10, %cst_24 {dimension_numbers = #tpu.dot_dimension_numbers<[1], [0], [0], [1], [0, 0, 1, 1], [], []>} : vector<2x32xf32>, vector<32x128xf32>, vector<2x128xf32> -> vector<2x128xf32>
    %79 = arith.addf %77, %78 : vector<2x128xf32>
    %80 = vector.extract_strided_slice %79 {offsets = [0, 0], sizes = [2, 96], strides = [1, 1]} : vector<2x128xf32> to vector<2x96xf32>
    %81 = arith.negf %80 : vector<2x96xf32>
    %82 = math.exp %81 : vector<2x96xf32>
    %cst_25 = arith.constant 1.000000e+00 : f32
    %83 = vector.broadcast %cst_25 : f32 to vector<2x96xf32>
    %84 = arith.addf %83, %82 : vector<2x96xf32>
    %85 = arith.divf %83, %84 : vector<2x96xf32>
    %86 = vector.extract_strided_slice %85 {offsets = [0, 0], sizes = [2, 32], strides = [1, 1]} : vector<2x96xf32> to vector<2x32xf32>
    %87 = vector.extract_strided_slice %85 {offsets = [0, 32], sizes = [2, 32], strides = [1, 1]} : vector<2x96xf32> to vector<2x32xf32>
    %88 = vector.extract_strided_slice %85 {offsets = [0, 64], sizes = [2, 32], strides = [1, 1]} : vector<2x96xf32> to vector<2x32xf32>
    %89 = vector.extract_strided_slice %79 {offsets = [0, 96], sizes = [2, 32], strides = [1, 1]} : vector<2x128xf32> to vector<2x32xf32>
    %90 = math.tanh %89 : vector<2x32xf32>
    %91 = arith.mulf %87, %73 : vector<2x32xf32>
    %92 = arith.mulf %86, %90 : vector<2x32xf32>
    %93 = arith.addf %91, %92 : vector<2x32xf32>
    %94 = math.tanh %93 : vector<2x32xf32>
    %95 = arith.mulf %88, %94 : vector<2x32xf32>
    %c6 = arith.constant 6 : index
    %c0_26 = arith.constant 0 : index
    %96 = vector.load %arg10[%c6, %c0_26] : memref<16x32xf32, #tpu.memory_space<vmem>>, vector<2x32xf32>
    tpu.vector_store %arg10[%c6, %c0_26], %95 {strides = array<i32>} : memref<16x32xf32, #tpu.memory_space<vmem>>, vector<2x32xf32>,
    %97 = vector.extract_strided_slice %14 {offsets = [8, 0], sizes = [2, 128], strides = [1, 1]} : vector<16x128xf32> to vector<2x128xf32>
    %cst_27 = arith.constant dense<0.000000e+00> : vector<2x128xf32>
    %98 = tpu.matmul %95, %10, %cst_27 {dimension_numbers = #tpu.dot_dimension_numbers<[1], [0], [0], [1], [0, 0, 1, 1], [], []>} : vector<2x32xf32>, vector<32x128xf32>, vector<2x128xf32> -> vector<2x128xf32>
    %99 = arith.addf %97, %98 : vector<2x128xf32>
    %100 = vector.extract_strided_slice %99 {offsets = [0, 0], sizes = [2, 96], strides = [1, 1]} : vector<2x128xf32> to vector<2x96xf32>
    %101 = arith.negf %100 : vector<2x96xf32>
    %102 = math.exp %101 : vector<2x96xf32>
    %cst_28 = arith.constant 1.000000e+00 : f32
    %103 = vector.broadcast %cst_28 : f32 to vector<2x96xf32>
    %104 = arith.addf %103, %102 : vector<2x96xf32>
    %105 = arith.divf %103, %104 : vector<2x96xf32>
    %106 = vector.extract_strided_slice %105 {offsets = [0, 0], sizes = [2, 32], strides = [1, 1]} : vector<2x96xf32> to vector<2x32xf32>
    %107 = vector.extract_strided_slice %105 {offsets = [0, 32], sizes = [2, 32], strides = [1, 1]} : vector<2x96xf32> to vector<2x32xf32>
    %108 = vector.extract_strided_slice %105 {offsets = [0, 64], sizes = [2, 32], strides = [1, 1]} : vector<2x96xf32> to vector<2x32xf32>
    %109 = vector.extract_strided_slice %99 {offsets = [0, 96], sizes = [2, 32], strides = [1, 1]} : vector<2x128xf32> to vector<2x32xf32>
    %110 = math.tanh %109 : vector<2x32xf32>
    %111 = arith.mulf %107, %93 : vector<2x32xf32>
    %112 = arith.mulf %106, %110 : vector<2x32xf32>
    %113 = arith.addf %111, %112 : vector<2x32xf32>
    %114 = math.tanh %113 : vector<2x32xf32>
    %115 = arith.mulf %108, %114 : vector<2x32xf32>
    %c8 = arith.constant 8 : index
    %c0_29 = arith.constant 0 : index
    %116 = vector.load %arg10[%c8, %c0_29] : memref<16x32xf32, #tpu.memory_space<vmem>>, vector<2x32xf32>
    tpu.vector_store %arg10[%c8, %c0_29], %115 {strides = array<i32>} : memref<16x32xf32, #tpu.memory_space<vmem>>, vector<2x32xf32>,
    %117 = vector.extract_strided_slice %14 {offsets = [10, 0], sizes = [2, 128], strides = [1, 1]} : vector<16x128xf32> to vector<2x128xf32>
    %cst_30 = arith.constant dense<0.000000e+00> : vector<2x128xf32>
    %118 = tpu.matmul %115, %10, %cst_30 {dimension_numbers = #tpu.dot_dimension_numbers<[1], [0], [0], [1], [0, 0, 1, 1], [], []>} : vector<2x32xf32>, vector<32x128xf32>, vector<2x128xf32> -> vector<2x128xf32>
    %119 = arith.addf %117, %118 : vector<2x128xf32>
    %120 = vector.extract_strided_slice %119 {offsets = [0, 0], sizes = [2, 96], strides = [1, 1]} : vector<2x128xf32> to vector<2x96xf32>
    %121 = arith.negf %120 : vector<2x96xf32>
    %122 = math.exp %121 : vector<2x96xf32>
    %cst_31 = arith.constant 1.000000e+00 : f32
    %123 = vector.broadcast %cst_31 : f32 to vector<2x96xf32>
    %124 = arith.addf %123, %122 : vector<2x96xf32>
    %125 = arith.divf %123, %124 : vector<2x96xf32>
    %126 = vector.extract_strided_slice %125 {offsets = [0, 0], sizes = [2, 32], strides = [1, 1]} : vector<2x96xf32> to vector<2x32xf32>
    %127 = vector.extract_strided_slice %125 {offsets = [0, 32], sizes = [2, 32], strides = [1, 1]} : vector<2x96xf32> to vector<2x32xf32>
    %128 = vector.extract_strided_slice %125 {offsets = [0, 64], sizes = [2, 32], strides = [1, 1]} : vector<2x96xf32> to vector<2x32xf32>
    %129 = vector.extract_strided_slice %119 {offsets = [0, 96], sizes = [2, 32], strides = [1, 1]} : vector<2x128xf32> to vector<2x32xf32>
    %130 = math.tanh %129 : vector<2x32xf32>
    %131 = arith.mulf %127, %113 : vector<2x32xf32>
    %132 = arith.mulf %126, %130 : vector<2x32xf32>
    %133 = arith.addf %131, %132 : vector<2x32xf32>
    %134 = math.tanh %133 : vector<2x32xf32>
    %135 = arith.mulf %128, %134 : vector<2x32xf32>
    %c10 = arith.constant 10 : index
    %c0_32 = arith.constant 0 : index
    %136 = vector.load %arg10[%c10, %c0_32] : memref<16x32xf32, #tpu.memory_space<vmem>>, vector<2x32xf32>
    tpu.vector_store %arg10[%c10, %c0_32], %135 {strides = array<i32>} : memref<16x32xf32, #tpu.memory_space<vmem>>, vector<2x32xf32>,
    %137 = vector.extract_strided_slice %14 {offsets = [12, 0], sizes = [2, 128], strides = [1, 1]} : vector<16x128xf32> to vector<2x128xf32>
    %cst_33 = arith.constant dense<0.000000e+00> : vector<2x128xf32>
    %138 = tpu.matmul %135, %10, %cst_33 {dimension_numbers = #tpu.dot_dimension_numbers<[1], [0], [0], [1], [0, 0, 1, 1], [], []>} : vector<2x32xf32>, vector<32x128xf32>, vector<2x128xf32> -> vector<2x128xf32>
    %139 = arith.addf %137, %138 : vector<2x128xf32>
    %140 = vector.extract_strided_slice %139 {offsets = [0, 0], sizes = [2, 96], strides = [1, 1]} : vector<2x128xf32> to vector<2x96xf32>
    %141 = arith.negf %140 : vector<2x96xf32>
    %142 = math.exp %141 : vector<2x96xf32>
    %cst_34 = arith.constant 1.000000e+00 : f32
    %143 = vector.broadcast %cst_34 : f32 to vector<2x96xf32>
    %144 = arith.addf %143, %142 : vector<2x96xf32>
    %145 = arith.divf %143, %144 : vector<2x96xf32>
    %146 = vector.extract_strided_slice %145 {offsets = [0, 0], sizes = [2, 32], strides = [1, 1]} : vector<2x96xf32> to vector<2x32xf32>
    %147 = vector.extract_strided_slice %145 {offsets = [0, 32], sizes = [2, 32], strides = [1, 1]} : vector<2x96xf32> to vector<2x32xf32>
    %148 = vector.extract_strided_slice %145 {offsets = [0, 64], sizes = [2, 32], strides = [1, 1]} : vector<2x96xf32> to vector<2x32xf32>
    %149 = vector.extract_strided_slice %139 {offsets = [0, 96], sizes = [2, 32], strides = [1, 1]} : vector<2x128xf32> to vector<2x32xf32>
    %150 = math.tanh %149 : vector<2x32xf32>
    %151 = arith.mulf %147, %133 : vector<2x32xf32>
    %152 = arith.mulf %146, %150 : vector<2x32xf32>
    %153 = arith.addf %151, %152 : vector<2x32xf32>
    %154 = math.tanh %153 : vector<2x32xf32>
    %155 = arith.mulf %148, %154 : vector<2x32xf32>
    %c12 = arith.constant 12 : index
    %c0_35 = arith.constant 0 : index
    %156 = vector.load %arg10[%c12, %c0_35] : memref<16x32xf32, #tpu.memory_space<vmem>>, vector<2x32xf32>
    tpu.vector_store %arg10[%c12, %c0_35], %155 {strides = array<i32>} : memref<16x32xf32, #tpu.memory_space<vmem>>, vector<2x32xf32>,
    %157 = vector.extract_strided_slice %14 {offsets = [14, 0], sizes = [2, 128], strides = [1, 1]} : vector<16x128xf32> to vector<2x128xf32>
    %cst_36 = arith.constant dense<0.000000e+00> : vector<2x128xf32>
    %158 = tpu.matmul %155, %10, %cst_36 {dimension_numbers = #tpu.dot_dimension_numbers<[1], [0], [0], [1], [0, 0, 1, 1], [], []>} : vector<2x32xf32>, vector<32x128xf32>, vector<2x128xf32> -> vector<2x128xf32>
    %159 = arith.addf %157, %158 : vector<2x128xf32>
    %160 = vector.extract_strided_slice %159 {offsets = [0, 0], sizes = [2, 96], strides = [1, 1]} : vector<2x128xf32> to vector<2x96xf32>
    %161 = arith.negf %160 : vector<2x96xf32>
    %162 = math.exp %161 : vector<2x96xf32>
    %cst_37 = arith.constant 1.000000e+00 : f32
    %163 = vector.broadcast %cst_37 : f32 to vector<2x96xf32>
    %164 = arith.addf %163, %162 : vector<2x96xf32>
    %165 = arith.divf %163, %164 : vector<2x96xf32>
    %166 = vector.extract_strided_slice %165 {offsets = [0, 0], sizes = [2, 32], strides = [1, 1]} : vector<2x96xf32> to vector<2x32xf32>
    %167 = vector.extract_strided_slice %165 {offsets = [0, 32], sizes = [2, 32], strides = [1, 1]} : vector<2x96xf32> to vector<2x32xf32>
    %168 = vector.extract_strided_slice %165 {offsets = [0, 64], sizes = [2, 32], strides = [1, 1]} : vector<2x96xf32> to vector<2x32xf32>
    %169 = vector.extract_strided_slice %159 {offsets = [0, 96], sizes = [2, 32], strides = [1, 1]} : vector<2x128xf32> to vector<2x32xf32>
    %170 = math.tanh %169 : vector<2x32xf32>
    %171 = arith.mulf %167, %153 : vector<2x32xf32>
    %172 = arith.mulf %166, %170 : vector<2x32xf32>
    %173 = arith.addf %171, %172 : vector<2x32xf32>
    %174 = math.tanh %173 : vector<2x32xf32>
    %175 = arith.mulf %168, %174 : vector<2x32xf32>
    %c14 = arith.constant 14 : index
    %c0_38 = arith.constant 0 : index
    %176 = vector.load %arg10[%c14, %c0_38] : memref<16x32xf32, #tpu.memory_space<vmem>>, vector<2x32xf32>
    tpu.vector_store %arg10[%c14, %c0_38], %175 {strides = array<i32>} : memref<16x32xf32, #tpu.memory_space<vmem>>, vector<2x32xf32>,
    %c0_39 = arith.constant 0 : index
    %c0_40 = arith.constant 0 : index
    %c0_41 = arith.constant 0 : index
    %177 = vector.load %arg8[%c0_39, %c0_40, %c0_41] : memref<2x2x32xf32, #tpu.memory_space<vmem>>, vector<1x2x32xf32>
    %178 = vector.shape_cast %177 : vector<1x2x32xf32> to vector<2x32xf32>
    %179 = vector.shape_cast %175 : vector<2x32xf32> to vector<1x2x32xf32>
    tpu.vector_store %arg8[%c0_39, %c0_40, %c0_41], %179 {strides = array<i32>} : memref<2x2x32xf32, #tpu.memory_space<vmem>>, vector<1x2x32xf32>,
    %c0_42 = arith.constant 0 : index
    %c0_43 = arith.constant 0 : index
    %c0_44 = arith.constant 0 : index
    %180 = vector.load %arg9[%c0_42, %c0_43, %c0_44] : memref<2x2x32xf32, #tpu.memory_space<vmem>>, vector<1x2x32xf32>
    %181 = vector.shape_cast %180 : vector<1x2x32xf32> to vector<2x32xf32>
    %182 = vector.shape_cast %173 : vector<2x32xf32> to vector<1x2x32xf32>
    tpu.vector_store %arg9[%c0_42, %c0_43, %c0_44], %182 {strides = array<i32>} : memref<2x2x32xf32, #tpu.memory_space<vmem>>, vector<1x2x32xf32>,
    %c0_45 = arith.constant 0 : index
    %c0_46 = arith.constant 0 : index
    %183 = vector.load %arg5[%c0_45, %c0_46] : memref<32x128xf32, #tpu.memory_space<vmem>>, vector<32x128xf32>
    %c0_47 = arith.constant 0 : index
    %c0_48 = arith.constant 0 : index
    %184 = vector.load %arg6[%c0_47, %c0_48] : memref<32x128xf32, #tpu.memory_space<vmem>>, vector<32x128xf32>
    %c0_49 = arith.constant 0 : index
    %c0_50 = arith.constant 0 : index
    %185 = vector.load %arg7[%c0_49, %c0_50] : memref<1x128xf32, #tpu.memory_space<vmem>>, vector<1x128xf32>
    %c0_51 = arith.constant 0 : index
    %c0_52 = arith.constant 0 : index
    %186 = vector.load %arg10[%c0_51, %c0_52] : memref<16x32xf32, #tpu.memory_space<vmem>>, vector<16x32xf32>
    %cst_53 = arith.constant dense<0.000000e+00> : vector<16x128xf32>
    %187 = tpu.matmul %186, %183, %cst_53 {dimension_numbers = #tpu.dot_dimension_numbers<[1], [0], [0], [1], [0, 0, 1, 1], [], []>} : vector<16x32xf32>, vector<32x128xf32>, vector<16x128xf32> -> vector<16x128xf32>
    %188 = vector.broadcast %185 : vector<1x128xf32> to vector<16x128xf32>
    %189 = arith.addf %187, %188 : vector<16x128xf32>
    %cst_54 = arith.constant 0.000000e+00 : f32
    %190 = vector.broadcast %cst_54 : f32 to vector<2x32xf32>
    %cst_55 = arith.constant 0.000000e+00 : f32
    %191 = vector.broadcast %cst_55 : f32 to vector<2x32xf32>
    %192 = vector.extract_strided_slice %189 {offsets = [0, 0], sizes = [2, 128], strides = [1, 1]} : vector<16x128xf32> to vector<2x128xf32>
    %cst_56 = arith.constant dense<0.000000e+00> : vector<2x128xf32>
    %193 = tpu.matmul %190, %184, %cst_56 {dimension_numbers = #tpu.dot_dimension_numbers<[1], [0], [0], [1], [0, 0, 1, 1], [], []>} : vector<2x32xf32>, vector<32x128xf32>, vector<2x128xf32> -> vector<2x128xf32>
    %194 = arith.addf %192, %193 : vector<2x128xf32>
    %195 = vector.extract_strided_slice %194 {offsets = [0, 0], sizes = [2, 96], strides = [1, 1]} : vector<2x128xf32> to vector<2x96xf32>
    %196 = arith.negf %195 : vector<2x96xf32>
    %197 = math.exp %196 : vector<2x96xf32>
    %cst_57 = arith.constant 1.000000e+00 : f32
    %198 = vector.broadcast %cst_57 : f32 to vector<2x96xf32>
    %199 = arith.addf %198, %197 : vector<2x96xf32>
    %200 = arith.divf %198, %199 : vector<2x96xf32>
    %201 = vector.extract_strided_slice %200 {offsets = [0, 0], sizes = [2, 32], strides = [1, 1]} : vector<2x96xf32> to vector<2x32xf32>
    %202 = vector.extract_strided_slice %200 {offsets = [0, 32], sizes = [2, 32], strides = [1, 1]} : vector<2x96xf32> to vector<2x32xf32>
    %203 = vector.extract_strided_slice %200 {offsets = [0, 64], sizes = [2, 32], strides = [1, 1]} : vector<2x96xf32> to vector<2x32xf32>
    %204 = vector.extract_strided_slice %194 {offsets = [0, 96], sizes = [2, 32], strides = [1, 1]} : vector<2x128xf32> to vector<2x32xf32>
    %205 = math.tanh %204 : vector<2x32xf32>
    %206 = arith.mulf %202, %191 : vector<2x32xf32>
    %207 = arith.mulf %201, %205 : vector<2x32xf32>
    %208 = arith.addf %206, %207 : vector<2x32xf32>
    %209 = math.tanh %208 : vector<2x32xf32>
    %210 = arith.mulf %203, %209 : vector<2x32xf32>
    %211 = vector.extract_strided_slice %189 {offsets = [2, 0], sizes = [2, 128], strides = [1, 1]} : vector<16x128xf32> to vector<2x128xf32>
    %cst_58 = arith.constant dense<0.000000e+00> : vector<2x128xf32>
    %212 = tpu.matmul %210, %184, %cst_58 {dimension_numbers = #tpu.dot_dimension_numbers<[1], [0], [0], [1], [0, 0, 1, 1], [], []>} : vector<2x32xf32>, vector<32x128xf32>, vector<2x128xf32> -> vector<2x128xf32>
    %213 = arith.addf %211, %212 : vector<2x128xf32>
    %214 = vector.extract_strided_slice %213 {offsets = [0, 0], sizes = [2, 96], strides = [1, 1]} : vector<2x128xf32> to vector<2x96xf32>
    %215 = arith.negf %214 : vector<2x96xf32>
    %216 = math.exp %215 : vector<2x96xf32>
    %cst_59 = arith.constant 1.000000e+00 : f32
    %217 = vector.broadcast %cst_59 : f32 to vector<2x96xf32>
    %218 = arith.addf %217, %216 : vector<2x96xf32>
    %219 = arith.divf %217, %218 : vector<2x96xf32>
    %220 = vector.extract_strided_slice %219 {offsets = [0, 0], sizes = [2, 32], strides = [1, 1]} : vector<2x96xf32> to vector<2x32xf32>
    %221 = vector.extract_strided_slice %219 {offsets = [0, 32], sizes = [2, 32], strides = [1, 1]} : vector<2x96xf32> to vector<2x32xf32>
    %222 = vector.extract_strided_slice %219 {offsets = [0, 64], sizes = [2, 32], strides = [1, 1]} : vector<2x96xf32> to vector<2x32xf32>
    %223 = vector.extract_strided_slice %213 {offsets = [0, 96], sizes = [2, 32], strides = [1, 1]} : vector<2x128xf32> to vector<2x32xf32>
    %224 = math.tanh %223 : vector<2x32xf32>
    %225 = arith.mulf %221, %208 : vector<2x32xf32>
    %226 = arith.mulf %220, %224 : vector<2x32xf32>
    %227 = arith.addf %225, %226 : vector<2x32xf32>
    %228 = math.tanh %227 : vector<2x32xf32>
    %229 = arith.mulf %222, %228 : vector<2x32xf32>
    %230 = vector.extract_strided_slice %189 {offsets = [4, 0], sizes = [2, 128], strides = [1, 1]} : vector<16x128xf32> to vector<2x128xf32>
    %cst_60 = arith.constant dense<0.000000e+00> : vector<2x128xf32>
    %231 = tpu.matmul %229, %184, %cst_60 {dimension_numbers = #tpu.dot_dimension_numbers<[1], [0], [0], [1], [0, 0, 1, 1], [], []>} : vector<2x32xf32>, vector<32x128xf32>, vector<2x128xf32> -> vector<2x128xf32>
    %232 = arith.addf %230, %231 : vector<2x128xf32>
    %233 = vector.extract_strided_slice %232 {offsets = [0, 0], sizes = [2, 96], strides = [1, 1]} : vector<2x128xf32> to vector<2x96xf32>
    %234 = arith.negf %233 : vector<2x96xf32>
    %235 = math.exp %234 : vector<2x96xf32>
    %cst_61 = arith.constant 1.000000e+00 : f32
    %236 = vector.broadcast %cst_61 : f32 to vector<2x96xf32>
    %237 = arith.addf %236, %235 : vector<2x96xf32>
    %238 = arith.divf %236, %237 : vector<2x96xf32>
    %239 = vector.extract_strided_slice %238 {offsets = [0, 0], sizes = [2, 32], strides = [1, 1]} : vector<2x96xf32> to vector<2x32xf32>
    %240 = vector.extract_strided_slice %238 {offsets = [0, 32], sizes = [2, 32], strides = [1, 1]} : vector<2x96xf32> to vector<2x32xf32>
    %241 = vector.extract_strided_slice %238 {offsets = [0, 64], sizes = [2, 32], strides = [1, 1]} : vector<2x96xf32> to vector<2x32xf32>
    %242 = vector.extract_strided_slice %232 {offsets = [0, 96], sizes = [2, 32], strides = [1, 1]} : vector<2x128xf32> to vector<2x32xf32>
    %243 = math.tanh %242 : vector<2x32xf32>
    %244 = arith.mulf %240, %227 : vector<2x32xf32>
    %245 = arith.mulf %239, %243 : vector<2x32xf32>
    %246 = arith.addf %244, %245 : vector<2x32xf32>
    %247 = math.tanh %246 : vector<2x32xf32>
    %248 = arith.mulf %241, %247 : vector<2x32xf32>
    %249 = vector.extract_strided_slice %189 {offsets = [6, 0], sizes = [2, 128], strides = [1, 1]} : vector<16x128xf32> to vector<2x128xf32>
    %cst_62 = arith.constant dense<0.000000e+00> : vector<2x128xf32>
    %250 = tpu.matmul %248, %184, %cst_62 {dimension_numbers = #tpu.dot_dimension_numbers<[1], [0], [0], [1], [0, 0, 1, 1], [], []>} : vector<2x32xf32>, vector<32x128xf32>, vector<2x128xf32> -> vector<2x128xf32>
    %251 = arith.addf %249, %250 : vector<2x128xf32>
    %252 = vector.extract_strided_slice %251 {offsets = [0, 0], sizes = [2, 96], strides = [1, 1]} : vector<2x128xf32> to vector<2x96xf32>
    %253 = arith.negf %252 : vector<2x96xf32>
    %254 = math.exp %253 : vector<2x96xf32>
    %cst_63 = arith.constant 1.000000e+00 : f32
    %255 = vector.broadcast %cst_63 : f32 to vector<2x96xf32>
    %256 = arith.addf %255, %254 : vector<2x96xf32>
    %257 = arith.divf %255, %256 : vector<2x96xf32>
    %258 = vector.extract_strided_slice %257 {offsets = [0, 0], sizes = [2, 32], strides = [1, 1]} : vector<2x96xf32> to vector<2x32xf32>
    %259 = vector.extract_strided_slice %257 {offsets = [0, 32], sizes = [2, 32], strides = [1, 1]} : vector<2x96xf32> to vector<2x32xf32>
    %260 = vector.extract_strided_slice %257 {offsets = [0, 64], sizes = [2, 32], strides = [1, 1]} : vector<2x96xf32> to vector<2x32xf32>
    %261 = vector.extract_strided_slice %251 {offsets = [0, 96], sizes = [2, 32], strides = [1, 1]} : vector<2x128xf32> to vector<2x32xf32>
    %262 = math.tanh %261 : vector<2x32xf32>
    %263 = arith.mulf %259, %246 : vector<2x32xf32>
    %264 = arith.mulf %258, %262 : vector<2x32xf32>
    %265 = arith.addf %263, %264 : vector<2x32xf32>
    %266 = math.tanh %265 : vector<2x32xf32>
    %267 = arith.mulf %260, %266 : vector<2x32xf32>
    %268 = vector.extract_strided_slice %189 {offsets = [8, 0], sizes = [2, 128], strides = [1, 1]} : vector<16x128xf32> to vector<2x128xf32>
    %cst_64 = arith.constant dense<0.000000e+00> : vector<2x128xf32>
    %269 = tpu.matmul %267, %184, %cst_64 {dimension_numbers = #tpu.dot_dimension_numbers<[1], [0], [0], [1], [0, 0, 1, 1], [], []>} : vector<2x32xf32>, vector<32x128xf32>, vector<2x128xf32> -> vector<2x128xf32>
    %270 = arith.addf %268, %269 : vector<2x128xf32>
    %271 = vector.extract_strided_slice %270 {offsets = [0, 0], sizes = [2, 96], strides = [1, 1]} : vector<2x128xf32> to vector<2x96xf32>
    %272 = arith.negf %271 : vector<2x96xf32>
    %273 = math.exp %272 : vector<2x96xf32>
    %cst_65 = arith.constant 1.000000e+00 : f32
    %274 = vector.broadcast %cst_65 : f32 to vector<2x96xf32>
    %275 = arith.addf %274, %273 : vector<2x96xf32>
    %276 = arith.divf %274, %275 : vector<2x96xf32>
    %277 = vector.extract_strided_slice %276 {offsets = [0, 0], sizes = [2, 32], strides = [1, 1]} : vector<2x96xf32> to vector<2x32xf32>
    %278 = vector.extract_strided_slice %276 {offsets = [0, 32], sizes = [2, 32], strides = [1, 1]} : vector<2x96xf32> to vector<2x32xf32>
    %279 = vector.extract_strided_slice %276 {offsets = [0, 64], sizes = [2, 32], strides = [1, 1]} : vector<2x96xf32> to vector<2x32xf32>
    %280 = vector.extract_strided_slice %270 {offsets = [0, 96], sizes = [2, 32], strides = [1, 1]} : vector<2x128xf32> to vector<2x32xf32>
    %281 = math.tanh %280 : vector<2x32xf32>
    %282 = arith.mulf %278, %265 : vector<2x32xf32>
    %283 = arith.mulf %277, %281 : vector<2x32xf32>
    %284 = arith.addf %282, %283 : vector<2x32xf32>
    %285 = math.tanh %284 : vector<2x32xf32>
    %286 = arith.mulf %279, %285 : vector<2x32xf32>
    %287 = vector.extract_strided_slice %189 {offsets = [10, 0], sizes = [2, 128], strides = [1, 1]} : vector<16x128xf32> to vector<2x128xf32>
    %cst_66 = arith.constant dense<0.000000e+00> : vector<2x128xf32>
    %288 = tpu.matmul %286, %184, %cst_66 {dimension_numbers = #tpu.dot_dimension_numbers<[1], [0], [0], [1], [0, 0, 1, 1], [], []>} : vector<2x32xf32>, vector<32x128xf32>, vector<2x128xf32> -> vector<2x128xf32>
    %289 = arith.addf %287, %288 : vector<2x128xf32>
    %290 = vector.extract_strided_slice %289 {offsets = [0, 0], sizes = [2, 96], strides = [1, 1]} : vector<2x128xf32> to vector<2x96xf32>
    %291 = arith.negf %290 : vector<2x96xf32>
    %292 = math.exp %291 : vector<2x96xf32>
    %cst_67 = arith.constant 1.000000e+00 : f32
    %293 = vector.broadcast %cst_67 : f32 to vector<2x96xf32>
    %294 = arith.addf %293, %292 : vector<2x96xf32>
    %295 = arith.divf %293, %294 : vector<2x96xf32>
    %296 = vector.extract_strided_slice %295 {offsets = [0, 0], sizes = [2, 32], strides = [1, 1]} : vector<2x96xf32> to vector<2x32xf32>
    %297 = vector.extract_strided_slice %295 {offsets = [0, 32], sizes = [2, 32], strides = [1, 1]} : vector<2x96xf32> to vector<2x32xf32>
    %298 = vector.extract_strided_slice %295 {offsets = [0, 64], sizes = [2, 32], strides = [1, 1]} : vector<2x96xf32> to vector<2x32xf32>
    %299 = vector.extract_strided_slice %289 {offsets = [0, 96], sizes = [2, 32], strides = [1, 1]} : vector<2x128xf32> to vector<2x32xf32>
    %300 = math.tanh %299 : vector<2x32xf32>
    %301 = arith.mulf %297, %284 : vector<2x32xf32>
    %302 = arith.mulf %296, %300 : vector<2x32xf32>
    %303 = arith.addf %301, %302 : vector<2x32xf32>
    %304 = math.tanh %303 : vector<2x32xf32>
    %305 = arith.mulf %298, %304 : vector<2x32xf32>
    %306 = vector.extract_strided_slice %189 {offsets = [12, 0], sizes = [2, 128], strides = [1, 1]} : vector<16x128xf32> to vector<2x128xf32>
    %cst_68 = arith.constant dense<0.000000e+00> : vector<2x128xf32>
    %307 = tpu.matmul %305, %184, %cst_68 {dimension_numbers = #tpu.dot_dimension_numbers<[1], [0], [0], [1], [0, 0, 1, 1], [], []>} : vector<2x32xf32>, vector<32x128xf32>, vector<2x128xf32> -> vector<2x128xf32>
    %308 = arith.addf %306, %307 : vector<2x128xf32>
    %309 = vector.extract_strided_slice %308 {offsets = [0, 0], sizes = [2, 96], strides = [1, 1]} : vector<2x128xf32> to vector<2x96xf32>
    %310 = arith.negf %309 : vector<2x96xf32>
    %311 = math.exp %310 : vector<2x96xf32>
    %cst_69 = arith.constant 1.000000e+00 : f32
    %312 = vector.broadcast %cst_69 : f32 to vector<2x96xf32>
    %313 = arith.addf %312, %311 : vector<2x96xf32>
    %314 = arith.divf %312, %313 : vector<2x96xf32>
    %315 = vector.extract_strided_slice %314 {offsets = [0, 0], sizes = [2, 32], strides = [1, 1]} : vector<2x96xf32> to vector<2x32xf32>
    %316 = vector.extract_strided_slice %314 {offsets = [0, 32], sizes = [2, 32], strides = [1, 1]} : vector<2x96xf32> to vector<2x32xf32>
    %317 = vector.extract_strided_slice %314 {offsets = [0, 64], sizes = [2, 32], strides = [1, 1]} : vector<2x96xf32> to vector<2x32xf32>
    %318 = vector.extract_strided_slice %308 {offsets = [0, 96], sizes = [2, 32], strides = [1, 1]} : vector<2x128xf32> to vector<2x32xf32>
    %319 = math.tanh %318 : vector<2x32xf32>
    %320 = arith.mulf %316, %303 : vector<2x32xf32>
    %321 = arith.mulf %315, %319 : vector<2x32xf32>
    %322 = arith.addf %320, %321 : vector<2x32xf32>
    %323 = math.tanh %322 : vector<2x32xf32>
    %324 = arith.mulf %317, %323 : vector<2x32xf32>
    %325 = vector.extract_strided_slice %189 {offsets = [14, 0], sizes = [2, 128], strides = [1, 1]} : vector<16x128xf32> to vector<2x128xf32>
    %cst_70 = arith.constant dense<0.000000e+00> : vector<2x128xf32>
    %326 = tpu.matmul %324, %184, %cst_70 {dimension_numbers = #tpu.dot_dimension_numbers<[1], [0], [0], [1], [0, 0, 1, 1], [], []>} : vector<2x32xf32>, vector<32x128xf32>, vector<2x128xf32> -> vector<2x128xf32>
    %327 = arith.addf %325, %326 : vector<2x128xf32>
    %328 = vector.extract_strided_slice %327 {offsets = [0, 0], sizes = [2, 96], strides = [1, 1]} : vector<2x128xf32> to vector<2x96xf32>
    %329 = arith.negf %328 : vector<2x96xf32>
    %330 = math.exp %329 : vector<2x96xf32>
    %cst_71 = arith.constant 1.000000e+00 : f32
    %331 = vector.broadcast %cst_71 : f32 to vector<2x96xf32>
    %332 = arith.addf %331, %330 : vector<2x96xf32>
    %333 = arith.divf %331, %332 : vector<2x96xf32>
    %334 = vector.extract_strided_slice %333 {offsets = [0, 0], sizes = [2, 32], strides = [1, 1]} : vector<2x96xf32> to vector<2x32xf32>
    %335 = vector.extract_strided_slice %333 {offsets = [0, 32], sizes = [2, 32], strides = [1, 1]} : vector<2x96xf32> to vector<2x32xf32>
    %336 = vector.extract_strided_slice %333 {offsets = [0, 64], sizes = [2, 32], strides = [1, 1]} : vector<2x96xf32> to vector<2x32xf32>
    %337 = vector.extract_strided_slice %327 {offsets = [0, 96], sizes = [2, 32], strides = [1, 1]} : vector<2x128xf32> to vector<2x32xf32>
    %338 = math.tanh %337 : vector<2x32xf32>
    %339 = arith.mulf %335, %322 : vector<2x32xf32>
    %340 = arith.mulf %334, %338 : vector<2x32xf32>
    %341 = arith.addf %339, %340 : vector<2x32xf32>
    %342 = math.tanh %341 : vector<2x32xf32>
    %343 = arith.mulf %336, %342 : vector<2x32xf32>
    %c1 = arith.constant 1 : index
    %c0_72 = arith.constant 0 : index
    %c0_73 = arith.constant 0 : index
    %344 = vector.load %arg8[%c1, %c0_72, %c0_73] : memref<2x2x32xf32, #tpu.memory_space<vmem>>, vector<1x2x32xf32>
    %345 = vector.shape_cast %344 : vector<1x2x32xf32> to vector<2x32xf32>
    %346 = vector.shape_cast %343 : vector<2x32xf32> to vector<1x2x32xf32>
    tpu.vector_store %arg8[%c1, %c0_72, %c0_73], %346 {strides = array<i32>} : memref<2x2x32xf32, #tpu.memory_space<vmem>>, vector<1x2x32xf32>,
    %c1_74 = arith.constant 1 : index
    %c0_75 = arith.constant 0 : index
    %c0_76 = arith.constant 0 : index
    %347 = vector.load %arg9[%c1_74, %c0_75, %c0_76] : memref<2x2x32xf32, #tpu.memory_space<vmem>>, vector<1x2x32xf32>
    %348 = vector.shape_cast %347 : vector<1x2x32xf32> to vector<2x32xf32>
    %349 = vector.shape_cast %341 : vector<2x32xf32> to vector<1x2x32xf32>
    tpu.vector_store %arg9[%c1_74, %c0_75, %c0_76], %349 {strides = array<i32>} : memref<2x2x32xf32, #tpu.memory_space<vmem>>, vector<1x2x32xf32>,
    return
  }
}

</mosaic_0001>

<llo_original>
// kernel: encoder_forward_pallas.1
$region0: #{encoder_forward_pallas.1}
  #allocation0 [shape = 'u32[]', space=smem, size = 0x4, offset = 0x4, fixed_abs, tag = 'smem constant byte address 0x4 - core index']
  #allocation1 [shape = 'u32[144,128]{1,0:T(1,128)}', space=vmem, size = 0x12000, scoped, tag = 'internal scratch']
  #allocation2 [shape = 'f32[16,32]{1,0:T(8,128)}', space=vmem, size = 0x2000, scoped, tag = 'scratch operand']
  %s0 = inlined_call_operand.vmem [shape: s32[16,1], index: 0, kind: input, shape index: {}]
  %s1 = inlined_call_operand.vmem [shape: f32[56,32], index: 1, kind: input, shape index: {}]
  %s2 = inlined_call_operand.vmem [shape: f32[32,128], index: 2, kind: input, shape index: {}]
  %s3 = inlined_call_operand.vmem [shape: f32[32,128], index: 3, kind: input, shape index: {}]
  %s4 = inlined_call_operand.vmem [shape: f32[1,128], index: 4, kind: input, shape index: {}]
  %s5 = inlined_call_operand.vmem [shape: f32[32,128], index: 5, kind: input, shape index: {}]
  %s6 = inlined_call_operand.vmem [shape: f32[32,128], index: 6, kind: input, shape index: {}]
  %s7 = inlined_call_operand.vmem [shape: f32[1,128], index: 7, kind: input, shape index: {}]
  %s8 = inlined_call_operand.hbm [shape: f32[2,2,32], index: 8, kind: output, shape index: {0}]
  %s9 = inlined_call_operand.hbm [shape: f32[2,2,32], index: 9, kind: output, shape index: {1}]
  %10 = xla_tuple %s8, %s9
  %s11 = sld [smem:[#allocation0]]
  $region50: #{encoder_forward_pallas.1} parent=0
    _
  %s13 = ssub.s32 1, %s11
  %s14 = scalar_select 0, %s13, %s11
  $region1: #{encoder_forward_pallas.1} parent=0
    #allocation3 [shape = 'u8[2048]{0}', space=vmem, size = 0x800, scoped, tag = 'output window, operand 0, single buffered']
    #allocation4 [shape = 's32[1]{0}', space=sflag, size = 0x4, scoped, tag = 'scoped memory for encoder_forward_pallas.1']
    #allocation5 [shape = 'u8[2048]{0}', space=vmem, size = 0x800, scoped, tag = 'output window, operand 1, single buffered']
    #allocation6 [shape = 's32[1]{0}', space=sflag, size = 0x4, scoped, tag = 'scoped memory for encoder_forward_pallas.1']
    %15 = vsyncpa [#allocation4], 0
    %16 = vsyncpa [#allocation6], 0
    // Predicated region
    $region2: #{encoder_forward_pallas.1} parent=1 // pred_check
      _
    $region3: #{encoder_forward_pallas.1} parent=1 // pred_check_branch
      %18 = sbr.rel (0) target = $region5
    $region4: #{encoder_forward_pallas.1} parent=1 // pred_region
      _
    $region5: #{encoder_forward_pallas.1} parent=1 // pred_fallthru
      _
    // Predicated region
    $region6: #{encoder_forward_pallas.1} parent=1 // pred_check
      _
    $region7: #{encoder_forward_pallas.1} parent=1 // pred_check_branch
      %20 = sbr.rel (0) target = $region9
    $region8: #{encoder_forward_pallas.1} parent=1 // pred_region
      _
    $region9: #{encoder_forward_pallas.1} parent=1 // pred_fallthru
      _
    // Predicated region
    $region10: #{encoder_forward_pallas.1} parent=1 // pred_check
      _
    $region11: #{encoder_forward_pallas.1} parent=1 // pred_check_branch
      %22 = sbr.rel (0) target = $region13
    $region12: #{encoder_forward_pallas.1} parent=1 // pred_region
      _
    $region13: #{encoder_forward_pallas.1} parent=1 // pred_fallthru
      _
    // Predicated region
    $region14: #{encoder_forward_pallas.1} parent=1 // pred_check
      _
    $region15: #{encoder_forward_pallas.1} parent=1 // pred_check_branch
      %24 = sbr.rel (0) target = $region17
    $region16: #{encoder_forward_pallas.1} parent=1 // pred_region
      _
    $region17: #{encoder_forward_pallas.1} parent=1 // pred_fallthru
      _
    // Predicated region
    $region18: #{encoder_forward_pallas.1} parent=1 // pred_check
      _
    $region19: #{encoder_forward_pallas.1} parent=1 // pred_check_branch
      %26 = sbr.rel (0) target = $region21
    $region20: #{encoder_forward_pallas.1} parent=1 // pred_region
      _
    $region21: #{encoder_forward_pallas.1} parent=1 // pred_fallthru
      _
    // Predicated region
    $region22: #{encoder_forward_pallas.1} parent=1 // pred_check
      _
    $region23: #{encoder_forward_pallas.1} parent=1 // pred_check_branch
      %28 = sbr.rel (0) target = $region25
    $region24: #{encoder_forward_pallas.1} parent=1 // pred_region
      _
    $region25: #{encoder_forward_pallas.1} parent=1 // pred_fallthru
      _
    // Predicated region
    $region26: #{encoder_forward_pallas.1} parent=1 // pred_check
      _
    $region27: #{encoder_forward_pallas.1} parent=1 // pred_check_branch
      %30 = sbr.rel (0) target = $region29
    $region28: #{encoder_forward_pallas.1} parent=1 // pred_region
      _
    $region29: #{encoder_forward_pallas.1} parent=1 // pred_fallthru
      _
    // Predicated region
    $region30: #{encoder_forward_pallas.1} parent=1 // pred_check
      _
    $region31: #{encoder_forward_pallas.1} parent=1 // pred_check_branch
      %32 = sbr.rel (0) target = $region33
    $region32: #{encoder_forward_pallas.1} parent=1 // pred_region
      _
    $region33: #{encoder_forward_pallas.1} parent=1 // pred_fallthru
      _
    %v33 = vld [vmem:[%s0] sm:$0xff]
    %v34 = vld [vmem:[%s0 + $0x8] sm:$0xff]
    %v35 = vlaneseq
    %v36 = vand.u32 %v35, 127
    %37 = vset.pattern.permute.xlu0 0
    %38 = vperm.xlu0 %37, %v33
    %v39 = vpop.permute.xlu0 %38
    %40 = vset.pattern.permute.xlu0 0
    %41 = vperm.xlu0 %40, %v34
    %v42 = vpop.permute.xlu0 %41
    %vm43 = vcmp.eq.s32.totalorder %v36, %v39
    %vm44 = vcmp.eq.s32.totalorder %v36, %v42
    %v45 = vsel %vm43, 1.0, 0.0
    %v46 = vsel %vm44, 1.0, 0.0
    %v47 = vld [vmem:[%s1] sm:$0xff]
    %v48 = vld [vmem:[%s1 + $0x8] sm:$0xff]
    %v49 = vld [vmem:[%s1 + $0x10] sm:$0xff]
    %v50 = vld [vmem:[%s1 + $0x18] sm:$0xff]
    %v51 = vld [vmem:[%s1 + $0x20] sm:$0xff]
    %v52 = vld [vmem:[%s1 + $0x28] sm:$0xff]
    %v53 = vld [vmem:[%s1 + $0x30] sm:$0xff]
    %vm54 = vcmask 457728
    %v56 = vsel %vm54, %v45, 0
    %v59 = vsel %vm54, %v46, 0
    %61 = vmatprep.subr.mxu0 0.0
    %62 = vmatpush1.msra.mxu0 0.0
    %63 = vmatprep.subr.mxu0 0.0
    %64 = vmatpush1.msra.mxu0 0.0
    %65 = vmatprep.subr.mxu0 0.0
    %66 = vmatpush1.msra.mxu0 0.0
    %67 = vmatprep.subr.mxu0 0.0
    %68 = vmatpush1.msra.mxu0 0.0
    %69 = vmatprep.subr.mxu0 0.0
    %70 = vmatpush1.msra.mxu0 0.0
    %71 = vmatprep.subr.mxu0 0.0
    %72 = vmatpush1.msra.mxu0 0.0
    %73 = vmatprep.subr.mxu0 0.0
    %74 = vmatpush1.msra.mxu0 0.0
    %75 = vmatprep.subr.mxu0 0.0
    %76 = vmatpush1.msra.mxu0 0.0
    %77 = vmatprep.subr.mxu0 0.0
    %78 = vmatpush1.msra.mxu0 0.0
    %79 = vmatprep.subr.mxu0 0.0
    %80 = vmatpush1.msra.mxu0 %v53
    %81 = vmatprep.subr.mxu0 0.0
    %82 = vmatpush1.msra.mxu0 %v52
    %83 = vmatprep.subr.mxu0 0.0
    %84 = vmatpush1.msra.mxu0 %v51
    %85 = vmatprep.subr.mxu0 0.0
    %86 = vmatpush1.msra.mxu0 %v50
    %87 = vmatprep.subr.mxu0 0.0
    %88 = vmatpush1.msra.mxu0 %v49
    %89 = vmatprep.subr.mxu0 0.0
    %90 = vmatpush1.msra.mxu0 %v48
    %91 = vmatprep.subr.mxu0 0.0
    %92 = vmatpush1.msra.mxu0 %v47
    %93 = vmatprep.subr.mxu0 0.0
    %94 = vmatpush2.msra.mxu0 0.0
    %95 = vmatprep.subr.mxu0 0.0
    %96 = vmatpush2.msra.mxu0 0.0
    %97 = vmatprep.subr.mxu0 0.0
    %98 = vmatpush2.msra.mxu0 0.0
    %99 = vmatprep.subr.mxu0 0.0
    %100 = vmatpush2.msra.mxu0 0.0
    %101 = vmatprep.subr.mxu0 0.0
    %102 = vmatpush2.msra.mxu0 0.0
    %103 = vmatprep.subr.mxu0 0.0
    %104 = vmatpush2.msra.mxu0 0.0
    %105 = vmatprep.subr.mxu0 0.0
    %106 = vmatpush2.msra.mxu0 0.0
    %107 = vmatprep.subr.mxu0 0.0
    %108 = vmatpush2.msra.mxu0 0.0
    %109 = vmatprep.subr.mxu0 0.0
    %110 = vmatpush2.msra.mxu0 0.0
    %111 = vmatprep.subr.mxu0 0.0
    %112 = vmatpush2.msra.mxu0 0.0
    %113 = vmatprep.subr.mxu0 0.0
    %114 = vmatpush2.msra.mxu0 0.0
    %115 = vmatprep.subr.mxu0 0.0
    %116 = vmatpush2.msra.mxu0 0.0
    %117 = vmatprep.subr.mxu0 0.0
    %118 = vmatpush2.msra.mxu0 0.0
    %119 = vmatprep.subr.mxu0 0.0
    %120 = vmatpush2.msra.mxu0 0.0
    %121 = vmatprep.subr.mxu0 0.0
    %122 = vmatpush2.msra.mxu0 0.0
    %123 = vmatprep.subr.mxu0 0.0
    %124 = vmatpush2.msra.mxu0 0.0
    %125 = vmatprep.mubr.f32.mxu0 0.0
    %126 = vmatmul.mubr.f32.gmra.mxu0 %v56
    %v127 = vpop.f32.mrf.mxu0
    %v128 = vadd.f32 0.0, %v127
    %v129 = vpop.f32.mrf.mxu0
    %130 = vmatprep.mubr.f32.mxu0 0.0
    %131 = vmatmul.mubr.f32.gmra.mxu0 %v59
    %v132 = vpop.f32.mrf.mxu0
    %v133 = vadd.f32 0.0, %v132
    %v134 = vpop.f32.mrf.mxu0
    %135 = vdwg.mxu0
    %v136 = vld [vmem:[%s2] sm:$0xff]
    %v137 = vld [vmem:[%s2 + $0x8] sm:$0xff]
    %v138 = vld [vmem:[%s2 + $0x10] sm:$0xff]
    %v139 = vld [vmem:[%s2 + $0x18] sm:$0xff]
    %v140 = vld [vmem:[%s3] sm:$0xff]
    %v141 = vld [vmem:[%s3 + $0x8] sm:$0xff]
    %v142 = vld [vmem:[%s3 + $0x10] sm:$0xff]
    %v143 = vld [vmem:[%s3 + $0x18] sm:$0xff]
    %v144 = vld [vmem:[%s4] sm:$0x1]
    %v146 = vlaneseq
    %v147 = vshrl.u32 %v146, 7
    %v148 = vsub.s32 0, %v147
    %v149 = vrot.slane %v144, %v148
    %vm151 = vcmask 261120
    %v153 = vsel %vm151, %v128, 0
    %v156 = vsel %vm151, %v133, 0
    %158 = vmatprep.subr.mxu0 0.0
    %159 = vmatpush1.msra.mxu0 0.0
    %160 = vmatprep.subr.mxu0 0.0
    %161 = vmatpush1.msra.mxu0 0.0
    %162 = vmatprep.subr.mxu0 0.0
    %163 = vmatpush1.msra.mxu0 0.0
    %164 = vmatprep.subr.mxu0 0.0
    %165 = vmatpush1.msra.mxu0 0.0
    %166 = vmatprep.subr.mxu0 0.0
    %167 = vmatpush1.msra.mxu0 0.0
    %168 = vmatprep.subr.mxu0 0.0
    %169 = vmatpush1.msra.mxu0 0.0
    %170 = vmatprep.subr.mxu0 0.0
    %171 = vmatpush1.msra.mxu0 0.0
    %172 = vmatprep.subr.mxu0 0.0
    %173 = vmatpush1.msra.mxu0 0.0
    %174 = vmatprep.subr.mxu0 0.0
    %175 = vmatpush1.msra.mxu0 0.0
    %176 = vmatprep.subr.mxu0 0.0
    %177 = vmatpush1.msra.mxu0 0.0
    %178 = vmatprep.subr.mxu0 0.0
    %179 = vmatpush1.msra.mxu0 0.0
    %180 = vmatprep.subr.mxu0 0.0
    %181 = vmatpush1.msra.mxu0 0.0
    %182 = vmatprep.subr.mxu0 0.0
    %183 = vmatpush1.msra.mxu0 %v139
    %184 = vmatprep.subr.mxu0 0.0
    %185 = vmatpush1.msra.mxu0 %v138
    %186 = vmatprep.subr.mxu0 0.0
    %187 = vmatpush1.msra.mxu0 %v137
    %188 = vmatprep.subr.mxu0 0.0
    %189 = vmatpush1.msra.mxu0 %v136
    %190 = vmatprep.subr.mxu0 0.0
    %191 = vmatpush2.msra.mxu0 0.0
    %192 = vmatprep.subr.mxu0 0.0
    %193 = vmatpush2.msra.mxu0 0.0
    %194 = vmatprep.subr.mxu0 0.0
    %195 = vmatpush2.msra.mxu0 0.0
    %196 = vmatprep.subr.mxu0 0.0
    %197 = vmatpush2.msra.mxu0 0.0
    %198 = vmatprep.subr.mxu0 0.0
    %199 = vmatpush2.msra.mxu0 0.0
    %200 = vmatprep.subr.mxu0 0.0
    %201 = vmatpush2.msra.mxu0 0.0
    %202 = vmatprep.subr.mxu0 0.0
    %203 = vmatpush2.msra.mxu0 0.0
    %204 = vmatprep.subr.mxu0 0.0
    %205 = vmatpush2.msra.mxu0 0.0
    %206 = vmatprep.subr.mxu0 0.0
    %207 = vmatpush2.msra.mxu0 0.0
    %208 = vmatprep.subr.mxu0 0.0
    %209 = vmatpush2.msra.mxu0 0.0
    %210 = vmatprep.subr.mxu0 0.0
    %211 = vmatpush2.msra.mxu0 0.0
    %212 = vmatprep.subr.mxu0 0.0
    %213 = vmatpush2.msra.mxu0 0.0
    %214 = vmatprep.subr.mxu0 0.0
    %215 = vmatpush2.msra.mxu0 0.0
    %216 = vmatprep.subr.mxu0 0.0
    %217 = vmatpush2.msra.mxu0 0.0
    %218 = vmatprep.subr.mxu0 0.0
    %219 = vmatpush2.msra.mxu0 0.0
    %220 = vmatprep.subr.mxu0 0.0
    %221 = vmatpush2.msra.mxu0 0.0
    %222 = vmatprep.mubr.f32.mxu0 0.0
    %223 = vmatmul.mubr.f32.gmra.mxu0 %v153
    %v224 = vpop.f32.mrf.mxu0
    %v225 = vadd.f32 %v149, %v224
    %v226 = vpop.f32.mrf.mxu0
    %227 = vmatprep.mubr.f32.mxu0 0.0
    %228 = vmatmul.mubr.f32.gmra.mxu0 %v156
    %v229 = vpop.f32.mrf.mxu0
    %v230 = vadd.f32 %v149, %v229
    %v231 = vpop.f32.mrf.mxu0
    %232 = vdwg.mxu0
    %v234 = vsel %vm151, 0.0, 0
    %236 = vmatprep.subr.mxu0 0.0
    %237 = vmatpush1.msra.mxu0 0.0
    %238 = vmatprep.subr.mxu0 0.0
    %239 = vmatpush1.msra.mxu0 0.0
    %240 = vmatprep.subr.mxu0 0.0
    %241 = vmatpush1.msra.mxu0 0.0
    %242 = vmatprep.subr.mxu0 0.0
    %243 = vmatpush1.msra.mxu0 0.0
    %244 = vmatprep.subr.mxu0 0.0
    %245 = vmatpush1.msra.mxu0 0.0
    %246 = vmatprep.subr.mxu0 0.0
    %247 = vmatpush1.msra.mxu0 0.0
    %248 = vmatprep.subr.mxu0 0.0
    %249 = vmatpush1.msra.mxu0 0.0
    %250 = vmatprep.subr.mxu0 0.0
    %251 = vmatpush1.msra.mxu0 0.0
    %252 = vmatprep.subr.mxu0 0.0
    %253 = vmatpush1.msra.mxu0 0.0
    %254 = vmatprep.subr.mxu0 0.0
    %255 = vmatpush1.msra.mxu0 0.0
    %256 = vmatprep.subr.mxu0 0.0
    %257 = vmatpush1.msra.mxu0 0.0
    %258 = vmatprep.subr.mxu0 0.0
    %259 = vmatpush1.msra.mxu0 0.0
    %260 = vmatprep.subr.mxu0 0.0
    %261 = vmatpush1.msra.mxu0 %v143
    %262 = vmatprep.subr.mxu0 0.0
    %263 = vmatpush1.msra.mxu0 %v142
    %264 = vmatprep.subr.mxu0 0.0
    %265 = vmatpush1.msra.mxu0 %v141
    %266 = vmatprep.subr.mxu0 0.0
    %267 = vmatpush1.msra.mxu0 %v140
    %268 = vmatprep.subr.mxu0 0.0
    %269 = vmatpush2.msra.mxu0 0.0
    %270 = vmatprep.subr.mxu0 0.0
    %271 = vmatpush2.msra.mxu0 0.0
    %272 = vmatprep.subr.mxu0 0.0
    %273 = vmatpush2.msra.mxu0 0.0
    %274 = vmatprep.subr.mxu0 0.0
    %275 = vmatpush2.msra.mxu0 0.0
    %276 = vmatprep.subr.mxu0 0.0
    %277 = vmatpush2.msra.mxu0 0.0
    %278 = vmatprep.subr.mxu0 0.0
    %279 = vmatpush2.msra.mxu0 0.0
    %280 = vmatprep.subr.mxu0 0.0
    %281 = vmatpush2.msra.mxu0 0.0
    %282 = vmatprep.subr.mxu0 0.0
    %283 = vmatpush2.msra.mxu0 0.0
    %284 = vmatprep.subr.mxu0 0.0
    %285 = vmatpush2.msra.mxu0 0.0
    %286 = vmatprep.subr.mxu0 0.0
    %287 = vmatpush2.msra.mxu0 0.0
    %288 = vmatprep.subr.mxu0 0.0
    %289 = vmatpush2.msra.mxu0 0.0
    %290 = vmatprep.subr.mxu0 0.0
    %291 = vmatpush2.msra.mxu0 0.0
    %292 = vmatprep.subr.mxu0 0.0
    %293 = vmatpush2.msra.mxu0 0.0
    %294 = vmatprep.subr.mxu0 0.0
    %295 = vmatpush2.msra.mxu0 0.0
    %296 = vmatprep.subr.mxu0 0.0
    %297 = vmatpush2.msra.mxu0 0.0
    %298 = vmatprep.subr.mxu0 0.0
    %299 = vmatpush2.msra.mxu0 0.0
    %300 = vmatprep.mubr.f32.mxu0 0.0
    %301 = vmatmul.mubr.f32.gmra.mxu0 %v234
    %v302 = vpop.f32.mrf.mxu0
    %v303 = vadd.f32 0.0, %v302
    %v304 = vpop.f32.mrf.mxu0
    %305 = vdwg.mxu0
    %v306 = vadd.f32 %v225, %v303
    %v307 = vxor.u32 %v306, 2147483648
    %v308 = vmul.f32 %v307, 1.442695
    %v309 = vpow.pop %v308
    %v310 = vadd.f32 %v309, 1.0
    %v311 = vrcp.pop %v310
    %v312 = vmul.f32 1.0, %v311
    %v313 = vtanh.pop %v306
    %v314 = vmul.f32 %v312, 0.0
    %316 = vrot.lane.b32.xlu0 %v313, 32
    %v317 = vpop.permute.xlu0 %316
    %v319 = vmul.f32 %v312, %v317
    %321 = vrot.lane.b32.xlu0 %v319, 32
    %v322 = vpop.permute.xlu0 %321
    %v324 = vadd.f32 %v314, %v322
    %v325 = vtanh.pop %v324
    %327 = vrot.lane.b32.xlu0 %v325, 32
    %v328 = vpop.permute.xlu0 %327
    %v330 = vmul.f32 %v312, %v328
    %332 = vrot.lane.b32.xlu0 %v330, 64
    %v333 = vpop.permute.xlu0 %332
    %vm335 = vcmask 254976
    %336 = vst.msk [vmem:[#allocation2] sm:$0x3] %vm335, %v333
    %v337 = vsel %vm151, %v333, 0
    %339 = vmatprep.subr.mxu0 0.0
    %340 = vmatpush1.msra.mxu0 0.0
    %341 = vmatprep.subr.mxu0 0.0
    %342 = vmatpush1.msra.mxu0 0.0
    %343 = vmatprep.subr.mxu0 0.0
    %344 = vmatpush1.msra.mxu0 0.0
    %345 = vmatprep.subr.mxu0 0.0
    %346 = vmatpush1.msra.mxu0 0.0
    %347 = vmatprep.subr.mxu0 0.0
    %348 = vmatpush1.msra.mxu0 0.0
    %349 = vmatprep.subr.mxu0 0.0
    %350 = vmatpush1.msra.mxu0 0.0
    %351 = vmatprep.subr.mxu0 0.0
    %352 = vmatpush1.msra.mxu0 0.0
    %353 = vmatprep.subr.mxu0 0.0
    %354 = vmatpush1.msra.mxu0 0.0
    %355 = vmatprep.subr.mxu0 0.0
    %356 = vmatpush1.msra.mxu0 0.0
    %357 = vmatprep.subr.mxu0 0.0
    %358 = vmatpush1.msra.mxu0 0.0
    %359 = vmatprep.subr.mxu0 0.0
    %360 = vmatpush1.msra.mxu0 0.0
    %361 = vmatprep.subr.mxu0 0.0
    %362 = vmatpush1.msra.mxu0 0.0
    %363 = vmatprep.subr.mxu0 0.0
    %364 = vmatpush1.msra.mxu0 %v143
    %365 = vmatprep.subr.mxu0 0.0
    %366 = vmatpush1.msra.mxu0 %v142
    %367 = vmatprep.subr.mxu0 0.0
    %368 = vmatpush1.msra.mxu0 %v141
    %369 = vmatprep.subr.mxu0 0.0
    %370 = vmatpush1.msra.mxu0 %v140
    %371 = vmatprep.subr.mxu0 0.0
    %372 = vmatpush2.msra.mxu0 0.0
    %373 = vmatprep.subr.mxu0 0.0
    %374 = vmatpush2.msra.mxu0 0.0
    %375 = vmatprep.subr.mxu0 0.0
    %376 = vmatpush2.msra.mxu0 0.0
    %377 = vmatprep.subr.mxu0 0.0
    %378 = vmatpush2.msra.mxu0 0.0
    %379 = vmatprep.subr.mxu0 0.0
    %380 = vmatpush2.msra.mxu0 0.0
    %381 = vmatprep.subr.mxu0 0.0
    %382 = vmatpush2.msra.mxu0 0.0
    %383 = vmatprep.subr.mxu0 0.0
    %384 = vmatpush2.msra.mxu0 0.0
    %385 = vmatprep.subr.mxu0 0.0
    %386 = vmatpush2.msra.mxu0 0.0
    %387 = vmatprep.subr.mxu0 0.0
    %388 = vmatpush2.msra.mxu0 0.0
    %389 = vmatprep.subr.mxu0 0.0
    %390 = vmatpush2.msra.mxu0 0.0
    %391 = vmatprep.subr.mxu0 0.0
    %392 = vmatpush2.msra.mxu0 0.0
    %393 = vmatprep.subr.mxu0 0.0
    %394 = vmatpush2.msra.mxu0 0.0
    %395 = vmatprep.subr.mxu0 0.0
    %396 = vmatpush2.msra.mxu0 0.0
    %397 = vmatprep.subr.mxu0 0.0
    %398 = vmatpush2.msra.mxu0 0.0
    %399 = vmatprep.subr.mxu0 0.0
    %400 = vmatpush2.msra.mxu0 0.0
    %401 = vmatprep.subr.mxu0 0.0
    %402 = vmatpush2.msra.mxu0 0.0
    %403 = vmatprep.mubr.f32.mxu0 0.0
    %404 = vmatmul.mubr.f32.gmra.mxu0 %v337
    %v405 = vpop.f32.mrf.mxu0
    %v406 = vadd.f32 0.0, %v405
    %v407 = vpop.f32.mrf.mxu0
    %408 = vdwg.mxu0
    %v410 = vrot.slane %v406, 6
    %v412 = vadd.f32 %v225, %v410
    %v413 = vxor.u32 %v412, 2147483648
    %v414 = vmul.f32 %v413, 1.442695
    %v415 = vpow.pop %v414
    %v416 = vadd.f32 %v415, 1.0
    %v417 = vrcp.pop %v416
    %v418 = vmul.f32 1.0, %v417
    %v419 = vtanh.pop %v412
    %v421 = vrot.slane %v324, 6
    %v423 = vmul.f32 %v418, %v421
    %425 = vrot.lane.b32.xlu0 %v419, 32
    %v426 = vpop.permute.xlu0 %425
    %v428 = vmul.f32 %v418, %v426
    %430 = vrot.lane.b32.xlu0 %v428, 32
    %v431 = vpop.permute.xlu0 %430
    %v433 = vadd.f32 %v423, %v431
    %v434 = vtanh.pop %v433
    %436 = vrot.lane.b32.xlu0 %v434, 32
    %v437 = vpop.permute.xlu0 %436
    %v439 = vmul.f32 %v418, %v437
    %441 = vrot.lane.b32.xlu0 %v439, 64
    %v442 = vpop.permute.xlu0 %441
    %vm444 = vcmask 257026
    %445 = vst.msk [vmem:[#allocation2] sm:$0xc] %vm444, %v442
    %v446 = vrot.slane %v439, 2
    %447 = vrot.lane.b32.xlu0 %v446, 64
    %v448 = vpop.permute.xlu0 %447
    %v449 = vsel %vm151, %v448, 0
    %451 = vmatprep.subr.mxu0 0.0
    %452 = vmatpush1.msra.mxu0 0.0
    %453 = vmatprep.subr.mxu0 0.0
    %454 = vmatpush1.msra.mxu0 0.0
    %455 = vmatprep.subr.mxu0 0.0
    %456 = vmatpush1.msra.mxu0 0.0
    %457 = vmatprep.subr.mxu0 0.0
    %458 = vmatpush1.msra.mxu0 0.0
    %459 = vmatprep.subr.mxu0 0.0
    %460 = vmatpush1.msra.mxu0 0.0
    %461 = vmatprep.subr.mxu0 0.0
    %462 = vmatpush1.msra.mxu0 0.0
    %463 = vmatprep.subr.mxu0 0.0
    %464 = vmatpush1.msra.mxu0 0.0
    %465 = vmatprep.subr.mxu0 0.0
    %466 = vmatpush1.msra.mxu0 0.0
    %467 = vmatprep.subr.mxu0 0.0
    %468 = vmatpush1.msra.mxu0 0.0
    %469 = vmatprep.subr.mxu0 0.0
    %470 = vmatpush1.msra.mxu0 0.0
    %471 = vmatprep.subr.mxu0 0.0
    %472 = vmatpush1.msra.mxu0 0.0
    %473 = vmatprep.subr.mxu0 0.0
    %474 = vmatpush1.msra.mxu0 0.0
    %475 = vmatprep.subr.mxu0 0.0
    %476 = vmatpush1.msra.mxu0 %v143
    %477 = vmatprep.subr.mxu0 0.0
    %478 = vmatpush1.msra.mxu0 %v142
    %479 = vmatprep.subr.mxu0 0.0
    %480 = vmatpush1.msra.mxu0 %v141
    %481 = vmatprep.subr.mxu0 0.0
    %482 = vmatpush1.msra.mxu0 %v140
    %483 = vmatprep.subr.mxu0 0.0
    %484 = vmatpush2.msra.mxu0 0.0
    %485 = vmatprep.subr.mxu0 0.0
    %486 = vmatpush2.msra.mxu0 0.0
    %487 = vmatprep.subr.mxu0 0.0
    %488 = vmatpush2.msra.mxu0 0.0
    %489 = vmatprep.subr.mxu0 0.0
    %490 = vmatpush2.msra.mxu0 0.0
    %491 = vmatprep.subr.mxu0 0.0
    %492 = vmatpush2.msra.mxu0 0.0
    %493 = vmatprep.subr.mxu0 0.0
    %494 = vmatpush2.msra.mxu0 0.0
    %495 = vmatprep.subr.mxu0 0.0
    %496 = vmatpush2.msra.mxu0 0.0
    %497 = vmatprep.subr.mxu0 0.0
    %498 = vmatpush2.msra.mxu0 0.0
    %499 = vmatprep.subr.mxu0 0.0
    %500 = vmatpush2.msra.mxu0 0.0
    %501 = vmatprep.subr.mxu0 0.0
    %502 = vmatpush2.msra.mxu0 0.0
    %503 = vmatprep.subr.mxu0 0.0
    %504 = vmatpush2.msra.mxu0 0.0
    %505 = vmatprep.subr.mxu0 0.0
    %506 = vmatpush2.msra.mxu0 0.0
    %507 = vmatprep.subr.mxu0 0.0
    %508 = vmatpush2.msra.mxu0 0.0
    %509 = vmatprep.subr.mxu0 0.0
    %510 = vmatpush2.msra.mxu0 0.0
    %511 = vmatprep.subr.mxu0 0.0
    %512 = vmatpush2.msra.mxu0 0.0
    %513 = vmatprep.subr.mxu0 0.0
    %514 = vmatpush2.msra.mxu0 0.0
    %515 = vmatprep.mubr.f32.mxu0 0.0
    %516 = vmatmul.mubr.f32.gmra.mxu0 %v449
    %v517 = vpop.f32.mrf.mxu0
    %v518 = vadd.f32 0.0, %v517
    %v519 = vpop.f32.mrf.mxu0
    %520 = vdwg.mxu0
    %v522 = vrot.slane %v518, 4
    %v524 = vadd.f32 %v225, %v522
    %v525 = vxor.u32 %v524, 2147483648
    %v526 = vmul.f32 %v525, 1.442695
    %v527 = vpow.pop %v526
    %v528 = vadd.f32 %v527, 1.0
    %v529 = vrcp.pop %v528
    %v530 = vmul.f32 1.0, %v529
    %v531 = vtanh.pop %v524
    %v533 = vrot.slane %v433, 6
    %v535 = vmul.f32 %v530, %v533
    %537 = vrot.lane.b32.xlu0 %v531, 32
    %v538 = vpop.permute.xlu0 %537
    %v540 = vmul.f32 %v530, %v538
    %542 = vrot.lane.b32.xlu0 %v540, 32
    %v543 = vpop.permute.xlu0 %542
    %v545 = vadd.f32 %v535, %v543
    %v546 = vtanh.pop %v545
    %548 = vrot.lane.b32.xlu0 %v546, 32
    %v549 = vpop.permute.xlu0 %548
    %v551 = vmul.f32 %v530, %v549
    %553 = vrot.lane.b32.xlu0 %v551, 64
    %v554 = vpop.permute.xlu0 %553
    %vm556 = vcmask 259076
    %557 = vst.msk [vmem:[#allocation2] sm:$0x30] %vm556, %v554
    %v558 = vrot.slane %v551, 4
    %559 = vrot.lane.b32.xlu0 %v558, 64
    %v560 = vpop.permute.xlu0 %559
    %v561 = vsel %vm151, %v560, 0
    %563 = vmatprep.subr.mxu0 0.0
    %564 = vmatpush1.msra.mxu0 0.0
    %565 = vmatprep.subr.mxu0 0.0
    %566 = vmatpush1.msra.mxu0 0.0
    %567 = vmatprep.subr.mxu0 0.0
    %568 = vmatpush1.msra.mxu0 0.0
    %569 = vmatprep.subr.mxu0 0.0
    %570 = vmatpush1.msra.mxu0 0.0
    %571 = vmatprep.subr.mxu0 0.0
    %572 = vmatpush1.msra.mxu0 0.0
    %573 = vmatprep.subr.mxu0 0.0
    %574 = vmatpush1.msra.mxu0 0.0
    %575 = vmatprep.subr.mxu0 0.0
    %576 = vmatpush1.msra.mxu0 0.0
    %577 = vmatprep.subr.mxu0 0.0
    %578 = vmatpush1.msra.mxu0 0.0
    %579 = vmatprep.subr.mxu0 0.0
    %580 = vmatpush1.msra.mxu0 0.0
    %581 = vmatprep.subr.mxu0 0.0
    %582 = vmatpush1.msra.mxu0 0.0
    %583 = vmatprep.subr.mxu0 0.0
    %584 = vmatpush1.msra.mxu0 0.0
    %585 = vmatprep.subr.mxu0 0.0
    %586 = vmatpush1.msra.mxu0 0.0
    %587 = vmatprep.subr.mxu0 0.0
    %588 = vmatpush1.msra.mxu0 %v143
    %589 = vmatprep.subr.mxu0 0.0
    %590 = vmatpush1.msra.mxu0 %v142
    %591 = vmatprep.subr.mxu0 0.0
    %592 = vmatpush1.msra.mxu0 %v141
    %593 = vmatprep.subr.mxu0 0.0
    %594 = vmatpush1.msra.mxu0 %v140
    %595 = vmatprep.subr.mxu0 0.0
    %596 = vmatpush2.msra.mxu0 0.0
    %597 = vmatprep.subr.mxu0 0.0
    %598 = vmatpush2.msra.mxu0 0.0
    %599 = vmatprep.subr.mxu0 0.0
    %600 = vmatpush2.msra.mxu0 0.0
    %601 = vmatprep.subr.mxu0 0.0
    %602 = vmatpush2.msra.mxu0 0.0
    %603 = vmatprep.subr.mxu0 0.0
    %604 = vmatpush2.msra.mxu0 0.0
    %605 = vmatprep.subr.mxu0 0.0
    %606 = vmatpush2.msra.mxu0 0.0
    %607 = vmatprep.subr.mxu0 0.0
    %608 = vmatpush2.msra.mxu0 0.0
    %609 = vmatprep.subr.mxu0 0.0
    %610 = vmatpush2.msra.mxu0 0.0
    %611 = vmatprep.subr.mxu0 0.0
    %612 = vmatpush2.msra.mxu0 0.0
    %613 = vmatprep.subr.mxu0 0.0
    %614 = vmatpush2.msra.mxu0 0.0
    %615 = vmatprep.subr.mxu0 0.0
    %616 = vmatpush2.msra.mxu0 0.0
    %617 = vmatprep.subr.mxu0 0.0
    %618 = vmatpush2.msra.mxu0 0.0
    %619 = vmatprep.subr.mxu0 0.0
    %620 = vmatpush2.msra.mxu0 0.0
    %621 = vmatprep.subr.mxu0 0.0
    %622 = vmatpush2.msra.mxu0 0.0
    %623 = vmatprep.subr.mxu0 0.0
    %624 = vmatpush2.msra.mxu0 0.0
    %625 = vmatprep.subr.mxu0 0.0
    %626 = vmatpush2.msra.mxu0 0.0
    %627 = vmatprep.mubr.f32.mxu0 0.0
    %628 = vmatmul.mubr.f32.gmra.mxu0 %v561
    %v629 = vpop.f32.mrf.mxu0
    %v630 = vadd.f32 0.0, %v629
    %v631 = vpop.f32.mrf.mxu0
    %632 = vdwg.mxu0
    %v634 = vrot.slane %v630, 2
    %v636 = vadd.f32 %v225, %v634
    %v637 = vxor.u32 %v636, 2147483648
    %v638 = vmul.f32 %v637, 1.442695
    %v639 = vpow.pop %v638
    %v640 = vadd.f32 %v639, 1.0
    %v641 = vrcp.pop %v640
    %v642 = vmul.f32 1.0, %v641
    %v643 = vtanh.pop %v636
    %v645 = vrot.slane %v545, 6
    %v647 = vmul.f32 %v642, %v645
    %649 = vrot.lane.b32.xlu0 %v643, 32
    %v650 = vpop.permute.xlu0 %649
    %v652 = vmul.f32 %v642, %v650
    %654 = vrot.lane.b32.xlu0 %v652, 32
    %v655 = vpop.permute.xlu0 %654
    %v657 = vadd.f32 %v647, %v655
    %v658 = vtanh.pop %v657
    %660 = vrot.lane.b32.xlu0 %v658, 32
    %v661 = vpop.permute.xlu0 %660
    %v663 = vmul.f32 %v642, %v661
    %665 = vrot.lane.b32.xlu0 %v663, 64
    %v666 = vpop.permute.xlu0 %665
    %vm668 = vcmask 261126
    %669 = vst.msk [vmem:[#allocation2] sm:$0xc0] %vm668, %v666
    %v670 = vrot.slane %v663, 6
    %671 = vrot.lane.b32.xlu0 %v670, 64
    %v672 = vpop.permute.xlu0 %671
    %v673 = vsel %vm151, %v672, 0
    %675 = vmatprep.subr.mxu0 0.0
    %676 = vmatpush1.msra.mxu0 0.0
    %677 = vmatprep.subr.mxu0 0.0
    %678 = vmatpush1.msra.mxu0 0.0
    %679 = vmatprep.subr.mxu0 0.0
    %680 = vmatpush1.msra.mxu0 0.0
    %681 = vmatprep.subr.mxu0 0.0
    %682 = vmatpush1.msra.mxu0 0.0
    %683 = vmatprep.subr.mxu0 0.0
    %684 = vmatpush1.msra.mxu0 0.0
    %685 = vmatprep.subr.mxu0 0.0
    %686 = vmatpush1.msra.mxu0 0.0
    %687 = vmatprep.subr.mxu0 0.0
    %688 = vmatpush1.msra.mxu0 0.0
    %689 = vmatprep.subr.mxu0 0.0
    %690 = vmatpush1.msra.mxu0 0.0
    %691 = vmatprep.subr.mxu0 0.0
    %692 = vmatpush1.msra.mxu0 0.0
    %693 = vmatprep.subr.mxu0 0.0
    %694 = vmatpush1.msra.mxu0 0.0
    %695 = vmatprep.subr.mxu0 0.0
    %696 = vmatpush1.msra.mxu0 0.0
    %697 = vmatprep.subr.mxu0 0.0
    %698 = vmatpush1.msra.mxu0 0.0
    %699 = vmatprep.subr.mxu0 0.0
    %700 = vmatpush1.msra.mxu0 %v143
    %701 = vmatprep.subr.mxu0 0.0
    %702 = vmatpush1.msra.mxu0 %v142
    %703 = vmatprep.subr.mxu0 0.0
    %704 = vmatpush1.msra.mxu0 %v141
    %705 = vmatprep.subr.mxu0 0.0
    %706 = vmatpush1.msra.mxu0 %v140
    %707 = vmatprep.subr.mxu0 0.0
    %708 = vmatpush2.msra.mxu0 0.0
    %709 = vmatprep.subr.mxu0 0.0
    %710 = vmatpush2.msra.mxu0 0.0
    %711 = vmatprep.subr.mxu0 0.0
    %712 = vmatpush2.msra.mxu0 0.0
    %713 = vmatprep.subr.mxu0 0.0
    %714 = vmatpush2.msra.mxu0 0.0
    %715 = vmatprep.subr.mxu0 0.0
    %716 = vmatpush2.msra.mxu0 0.0
    %717 = vmatprep.subr.mxu0 0.0
    %718 = vmatpush2.msra.mxu0 0.0
    %719 = vmatprep.subr.mxu0 0.0
    %720 = vmatpush2.msra.mxu0 0.0
    %721 = vmatprep.subr.mxu0 0.0
    %722 = vmatpush2.msra.mxu0 0.0
    %723 = vmatprep.subr.mxu0 0.0
    %724 = vmatpush2.msra.mxu0 0.0
    %725 = vmatprep.subr.mxu0 0.0
    %726 = vmatpush2.msra.mxu0 0.0
    %727 = vmatprep.subr.mxu0 0.0
    %728 = vmatpush2.msra.mxu0 0.0
    %729 = vmatprep.subr.mxu0 0.0
    %730 = vmatpush2.msra.mxu0 0.0
    %731 = vmatprep.subr.mxu0 0.0
    %732 = vmatpush2.msra.mxu0 0.0
    %733 = vmatprep.subr.mxu0 0.0
    %734 = vmatpush2.msra.mxu0 0.0
    %735 = vmatprep.subr.mxu0 0.0
    %736 = vmatpush2.msra.mxu0 0.0
    %737 = vmatprep.subr.mxu0 0.0
    %738 = vmatpush2.msra.mxu0 0.0
    %739 = vmatprep.mubr.f32.mxu0 0.0
    %740 = vmatmul.mubr.f32.gmra.mxu0 %v673
    %v741 = vpop.f32.mrf.mxu0
    %v742 = vadd.f32 0.0, %v741
    %v743 = vpop.f32.mrf.mxu0
    %744 = vdwg.mxu0
    %v745 = vadd.f32 %v230, %v742
    %v746 = vxor.u32 %v745, 2147483648
    %v747 = vmul.f32 %v746, 1.442695
    %v748 = vpow.pop %v747
    %v749 = vadd.f32 %v748, 1.0
    %v750 = vrcp.pop %v749
    %v751 = vmul.f32 1.0, %v750
    %v752 = vtanh.pop %v745
    %v754 = vrot.slane %v657, 6
    %v756 = vmul.f32 %v751, %v754
    %758 = vrot.lane.b32.xlu0 %v752, 32
    %v759 = vpop.permute.xlu0 %758
    %v761 = vmul.f32 %v751, %v759
    %763 = vrot.lane.b32.xlu0 %v761, 32
    %v764 = vpop.permute.xlu0 %763
    %v766 = vadd.f32 %v756, %v764
    %v767 = vtanh.pop %v766
    %769 = vrot.lane.b32.xlu0 %v767, 32
    %v770 = vpop.permute.xlu0 %769
    %v772 = vmul.f32 %v751, %v770
    %774 = vrot.lane.b32.xlu0 %v772, 64
    %v775 = vpop.permute.xlu0 %774
    %777 = vst.msk [vmem:[#allocation2 + $0x8] sm:$0x3] %vm335, %v775
    %v778 = vsel %vm151, %v775, 0
    %780 = vmatprep.subr.mxu0 0.0
    %781 = vmatpush1.msra.mxu0 0.0
    %782 = vmatprep.subr.mxu0 0.0
    %783 = vmatpush1.msra.mxu0 0.0
    %784 = vmatprep.subr.mxu0 0.0
    %785 = vmatpush1.msra.mxu0 0.0
    %786 = vmatprep.subr.mxu0 0.0
    %787 = vmatpush1.msra.mxu0 0.0
    %788 = vmatprep.subr.mxu0 0.0
    %789 = vmatpush1.msra.mxu0 0.0
    %790 = vmatprep.subr.mxu0 0.0
    %791 = vmatpush1.msra.mxu0 0.0
    %792 = vmatprep.subr.mxu0 0.0
    %793 = vmatpush1.msra.mxu0 0.0
    %794 = vmatprep.subr.mxu0 0.0
    %795 = vmatpush1.msra.mxu0 0.0
    %796 = vmatprep.subr.mxu0 0.0
    %797 = vmatpush1.msra.mxu0 0.0
    %798 = vmatprep.subr.mxu0 0.0
    %799 = vmatpush1.msra.mxu0 0.0
    %800 = vmatprep.subr.mxu0 0.0
    %801 = vmatpush1.msra.mxu0 0.0
    %802 = vmatprep.subr.mxu0 0.0
    %803 = vmatpush1.msra.mxu0 0.0
    %804 = vmatprep.subr.mxu0 0.0
    %805 = vmatpush1.msra.mxu0 %v143
    %806 = vmatprep.subr.mxu0 0.0
    %807 = vmatpush1.msra.mxu0 %v142
    %808 = vmatprep.subr.mxu0 0.0
    %809 = vmatpush1.msra.mxu0 %v141
    %810 = vmatprep.subr.mxu0 0.0
    %811 = vmatpush1.msra.mxu0 %v140
    %812 = vmatprep.subr.mxu0 0.0
    %813 = vmatpush2.msra.mxu0 0.0
    %814 = vmatprep.subr.mxu0 0.0
    %815 = vmatpush2.msra.mxu0 0.0
    %816 = vmatprep.subr.mxu0 0.0
    %817 = vmatpush2.msra.mxu0 0.0
    %818 = vmatprep.subr.mxu0 0.0
    %819 = vmatpush2.msra.mxu0 0.0
    %820 = vmatprep.subr.mxu0 0.0
    %821 = vmatpush2.msra.mxu0 0.0
    %822 = vmatprep.subr.mxu0 0.0
    %823 = vmatpush2.msra.mxu0 0.0
    %824 = vmatprep.subr.mxu0 0.0
    %825 = vmatpush2.msra.mxu0 0.0
    %826 = vmatprep.subr.mxu0 0.0
    %827 = vmatpush2.msra.mxu0 0.0
    %828 = vmatprep.subr.mxu0 0.0
    %829 = vmatpush2.msra.mxu0 0.0
    %830 = vmatprep.subr.mxu0 0.0
    %831 = vmatpush2.msra.mxu0 0.0
    %832 = vmatprep.subr.mxu0 0.0
    %833 = vmatpush2.msra.mxu0 0.0
    %834 = vmatprep.subr.mxu0 0.0
    %835 = vmatpush2.msra.mxu0 0.0
    %836 = vmatprep.subr.mxu0 0.0
    %837 = vmatpush2.msra.mxu0 0.0
    %838 = vmatprep.subr.mxu0 0.0
    %839 = vmatpush2.msra.mxu0 0.0
    %840 = vmatprep.subr.mxu0 0.0
    %841 = vmatpush2.msra.mxu0 0.0
    %842 = vmatprep.subr.mxu0 0.0
    %843 = vmatpush2.msra.mxu0 0.0
    %844 = vmatprep.mubr.f32.mxu0 0.0
    %845 = vmatmul.mubr.f32.gmra.mxu0 %v778
    %v846 = vpop.f32.mrf.mxu0
    %v847 = vadd.f32 0.0, %v846
    %v848 = vpop.f32.mrf.mxu0
    %849 = vdwg.mxu0
    %v851 = vrot.slane %v847, 6
    %v853 = vadd.f32 %v230, %v851
    %v854 = vxor.u32 %v853, 2147483648
    %v855 = vmul.f32 %v854, 1.442695
    %v856 = vpow.pop %v855
    %v857 = vadd.f32 %v856, 1.0
    %v858 = vrcp.pop %v857
    %v859 = vmul.f32 1.0, %v858
    %v860 = vtanh.pop %v853
    %v862 = vrot.slane %v766, 6
    %v864 = vmul.f32 %v859, %v862
    %866 = vrot.lane.b32.xlu0 %v860, 32
    %v867 = vpop.permute.xlu0 %866
    %v869 = vmul.f32 %v859, %v867
    %871 = vrot.lane.b32.xlu0 %v869, 32
    %v872 = vpop.permute.xlu0 %871
    %v874 = vadd.f32 %v864, %v872
    %v875 = vtanh.pop %v874
    %877 = vrot.lane.b32.xlu0 %v875, 32
    %v878 = vpop.permute.xlu0 %877
    %v880 = vmul.f32 %v859, %v878
    %882 = vrot.lane.b32.xlu0 %v880, 64
    %v883 = vpop.permute.xlu0 %882
    %885 = vst.msk [vmem:[#allocation2 + $0x8] sm:$0xc] %vm444, %v883
    %v886 = vrot.slane %v880, 2
    %887 = vrot.lane.b32.xlu0 %v886, 64
    %v888 = vpop.permute.xlu0 %887
    %v889 = vsel %vm151, %v888, 0
    %891 = vmatprep.subr.mxu0 0.0
    %892 = vmatpush1.msra.mxu0 0.0
    %893 = vmatprep.subr.mxu0 0.0
    %894 = vmatpush1.msra.mxu0 0.0
    %895 = vmatprep.subr.mxu0 0.0
    %896 = vmatpush1.msra.mxu0 0.0
    %897 = vmatprep.subr.mxu0 0.0
    %898 = vmatpush1.msra.mxu0 0.0
    %899 = vmatprep.subr.mxu0 0.0
    %900 = vmatpush1.msra.mxu0 0.0
    %901 = vmatprep.subr.mxu0 0.0
    %902 = vmatpush1.msra.mxu0 0.0
    %903 = vmatprep.subr.mxu0 0.0
    %904 = vmatpush1.msra.mxu0 0.0
    %905 = vmatprep.subr.mxu0 0.0
    %906 = vmatpush1.msra.mxu0 0.0
    %907 = vmatprep.subr.mxu0 0.0
    %908 = vmatpush1.msra.mxu0 0.0
    %909 = vmatprep.subr.mxu0 0.0
    %910 = vmatpush1.msra.mxu0 0.0
    %911 = vmatprep.subr.mxu0 0.0
    %912 = vmatpush1.msra.mxu0 0.0
    %913 = vmatprep.subr.mxu0 0.0
    %914 = vmatpush1.msra.mxu0 0.0
    %915 = vmatprep.subr.mxu0 0.0
    %916 = vmatpush1.msra.mxu0 %v143
    %917 = vmatprep.subr.mxu0 0.0
    %918 = vmatpush1.msra.mxu0 %v142
    %919 = vmatprep.subr.mxu0 0.0
    %920 = vmatpush1.msra.mxu0 %v141
    %921 = vmatprep.subr.mxu0 0.0
    %922 = vmatpush1.msra.mxu0 %v140
    %923 = vmatprep.subr.mxu0 0.0
    %924 = vmatpush2.msra.mxu0 0.0
    %925 = vmatprep.subr.mxu0 0.0
    %926 = vmatpush2.msra.mxu0 0.0
    %927 = vmatprep.subr.mxu0 0.0
    %928 = vmatpush2.msra.mxu0 0.0
    %929 = vmatprep.subr.mxu0 0.0
    %930 = vmatpush2.msra.mxu0 0.0
    %931 = vmatprep.subr.mxu0 0.0
    %932 = vmatpush2.msra.mxu0 0.0
    %933 = vmatprep.subr.mxu0 0.0
    %934 = vmatpush2.msra.mxu0 0.0
    %935 = vmatprep.subr.mxu0 0.0
    %936 = vmatpush2.msra.mxu0 0.0
    %937 = vmatprep.subr.mxu0 0.0
    %938 = vmatpush2.msra.mxu0 0.0
    %939 = vmatprep.subr.mxu0 0.0
    %940 = vmatpush2.msra.mxu0 0.0
    %941 = vmatprep.subr.mxu0 0.0
    %942 = vmatpush2.msra.mxu0 0.0
    %943 = vmatprep.subr.mxu0 0.0
    %944 = vmatpush2.msra.mxu0 0.0
    %945 = vmatprep.subr.mxu0 0.0
    %946 = vmatpush2.msra.mxu0 0.0
    %947 = vmatprep.subr.mxu0 0.0
    %948 = vmatpush2.msra.mxu0 0.0
    %949 = vmatprep.subr.mxu0 0.0
    %950 = vmatpush2.msra.mxu0 0.0
    %951 = vmatprep.subr.mxu0 0.0
    %952 = vmatpush2.msra.mxu0 0.0
    %953 = vmatprep.subr.mxu0 0.0
    %954 = vmatpush2.msra.mxu0 0.0
    %955 = vmatprep.mubr.f32.mxu0 0.0
    %956 = vmatmul.mubr.f32.gmra.mxu0 %v889
    %v957 = vpop.f32.mrf.mxu0
    %v958 = vadd.f32 0.0, %v957
    %v959 = vpop.f32.mrf.mxu0
    %960 = vdwg.mxu0
    %v962 = vrot.slane %v958, 4
    %v964 = vadd.f32 %v230, %v962
    %v965 = vxor.u32 %v964, 2147483648
    %v966 = vmul.f32 %v965, 1.442695
    %v967 = vpow.pop %v966
    %v968 = vadd.f32 %v967, 1.0
    %v969 = vrcp.pop %v968
    %v970 = vmul.f32 1.0, %v969
    %v971 = vtanh.pop %v964
    %v973 = vrot.slane %v874, 6
    %v975 = vmul.f32 %v970, %v973
    %977 = vrot.lane.b32.xlu0 %v971, 32
    %v978 = vpop.permute.xlu0 %977
    %v980 = vmul.f32 %v970, %v978
    %982 = vrot.lane.b32.xlu0 %v980, 32
    %v983 = vpop.permute.xlu0 %982
    %v985 = vadd.f32 %v975, %v983
    %v986 = vtanh.pop %v985
    %988 = vrot.lane.b32.xlu0 %v986, 32
    %v989 = vpop.permute.xlu0 %988
    %v991 = vmul.f32 %v970, %v989
    %993 = vrot.lane.b32.xlu0 %v991, 64
    %v994 = vpop.permute.xlu0 %993
    %996 = vst.msk [vmem:[#allocation2 + $0x8] sm:$0x30] %vm556, %v994
    %v997 = vrot.slane %v991, 4
    %998 = vrot.lane.b32.xlu0 %v997, 64
    %v999 = vpop.permute.xlu0 %998
    %v1000 = vsel %vm151, %v999, 0
    %1002 = vmatprep.subr.mxu0 0.0
    %1003 = vmatpush1.msra.mxu0 0.0
    %1004 = vmatprep.subr.mxu0 0.0
    %1005 = vmatpush1.msra.mxu0 0.0
    %1006 = vmatprep.subr.mxu0 0.0
    %1007 = vmatpush1.msra.mxu0 0.0
    %1008 = vmatprep.subr.mxu0 0.0
    %1009 = vmatpush1.msra.mxu0 0.0
    %1010 = vmatprep.subr.mxu0 0.0
    %1011 = vmatpush1.msra.mxu0 0.0
    %1012 = vmatprep.subr.mxu0 0.0
    %1013 = vmatpush1.msra.mxu0 0.0
    %1014 = vmatprep.subr.mxu0 0.0
    %1015 = vmatpush1.msra.mxu0 0.0
    %1016 = vmatprep.subr.mxu0 0.0
    %1017 = vmatpush1.msra.mxu0 0.0
    %1018 = vmatprep.subr.mxu0 0.0
    %1019 = vmatpush1.msra.mxu0 0.0
    %1020 = vmatprep.subr.mxu0 0.0
    %1021 = vmatpush1.msra.mxu0 0.0
    %1022 = vmatprep.subr.mxu0 0.0
    %1023 = vmatpush1.msra.mxu0 0.0
    %1024 = vmatprep.subr.mxu0 0.0
    %1025 = vmatpush1.msra.mxu0 0.0
    %1026 = vmatprep.subr.mxu0 0.0
    %1027 = vmatpush1.msra.mxu0 %v143
    %1028 = vmatprep.subr.mxu0 0.0
    %1029 = vmatpush1.msra.mxu0 %v142
    %1030 = vmatprep.subr.mxu0 0.0
    %1031 = vmatpush1.msra.mxu0 %v141
    %1032 = vmatprep.subr.mxu0 0.0
    %1033 = vmatpush1.msra.mxu0 %v140
    %1034 = vmatprep.subr.mxu0 0.0
    %1035 = vmatpush2.msra.mxu0 0.0
    %1036 = vmatprep.subr.mxu0 0.0
    %1037 = vmatpush2.msra.mxu0 0.0
    %1038 = vmatprep.subr.mxu0 0.0
    %1039 = vmatpush2.msra.mxu0 0.0
    %1040 = vmatprep.subr.mxu0 0.0
    %1041 = vmatpush2.msra.mxu0 0.0
    %1042 = vmatprep.subr.mxu0 0.0
    %1043 = vmatpush2.msra.mxu0 0.0
    %1044 = vmatprep.subr.mxu0 0.0
    %1045 = vmatpush2.msra.mxu0 0.0
    %1046 = vmatprep.subr.mxu0 0.0
    %1047 = vmatpush2.msra.mxu0 0.0
    %1048 = vmatprep.subr.mxu0 0.0
    %1049 = vmatpush2.msra.mxu0 0.0
    %1050 = vmatprep.subr.mxu0 0.0
    %1051 = vmatpush2.msra.mxu0 0.0
    %1052 = vmatprep.subr.mxu0 0.0
    %1053 = vmatpush2.msra.mxu0 0.0
    %1054 = vmatprep.subr.mxu0 0.0
    %1055 = vmatpush2.msra.mxu0 0.0
    %1056 = vmatprep.subr.mxu0 0.0
    %1057 = vmatpush2.msra.mxu0 0.0
    %1058 = vmatprep.subr.mxu0 0.0
    %1059 = vmatpush2.msra.mxu0 0.0
    %1060 = vmatprep.subr.mxu0 0.0
    %1061 = vmatpush2.msra.mxu0 0.0
    %1062 = vmatprep.subr.mxu0 0.0
    %1063 = vmatpush2.msra.mxu0 0.0
    %1064 = vmatprep.subr.mxu0 0.0
    %1065 = vmatpush2.msra.mxu0 0.0
    %1066 = vmatprep.mubr.f32.mxu0 0.0
    %1067 = vmatmul.mubr.f32.gmra.mxu0 %v1000
    %v1068 = vpop.f32.mrf.mxu0
    %v1069 = vadd.f32 0.0, %v1068
    %v1070 = vpop.f32.mrf.mxu0
    %1071 = vdwg.mxu0
    %v1073 = vrot.slane %v1069, 2
    %v1075 = vadd.f32 %v230, %v1073
    %v1076 = vxor.u32 %v1075, 2147483648
    %v1077 = vmul.f32 %v1076, 1.442695
    %v1078 = vpow.pop %v1077
    %v1079 = vadd.f32 %v1078, 1.0
    %v1080 = vrcp.pop %v1079
    %v1081 = vmul.f32 1.0, %v1080
    %v1082 = vtanh.pop %v1075
    %v1084 = vrot.slane %v985, 6
    %v1086 = vmul.f32 %v1081, %v1084
    %1088 = vrot.lane.b32.xlu0 %v1082, 32
    %v1089 = vpop.permute.xlu0 %1088
    %v1091 = vmul.f32 %v1081, %v1089
    %1093 = vrot.lane.b32.xlu0 %v1091, 32
    %v1094 = vpop.permute.xlu0 %1093
    %v1096 = vadd.f32 %v1086, %v1094
    %v1097 = vtanh.pop %v1096
    %1099 = vrot.lane.b32.xlu0 %v1097, 32
    %v1100 = vpop.permute.xlu0 %1099
    %v1102 = vmul.f32 %v1081, %v1100
    %1104 = vrot.lane.b32.xlu0 %v1102, 64
    %v1105 = vpop.permute.xlu0 %1104
    %1107 = vst.msk [vmem:[#allocation2 + $0x8] sm:$0xc0] %vm668, %v1105
    %1108 = vst.msk [vmem:[#allocation3 - $0x6] sm:$0xc0] %vm668, %v1105
    %1110 = vrot.lane.b32.xlu0 %v1096, 96
    %v1111 = vpop.permute.xlu0 %1110
    %1113 = vst.msk [vmem:[#allocation5 - $0x6] sm:$0xc0] %vm668, %v1111
    %v1114 = vld [vmem:[%s5] sm:$0xff]
    %v1115 = vld [vmem:[%s5 + $0x8] sm:$0xff]
    %v1116 = vld [vmem:[%s5 + $0x10] sm:$0xff]
    %v1117 = vld [vmem:[%s5 + $0x18] sm:$0xff]
    %v1118 = vld [vmem:[%s6] sm:$0xff]
    %v1119 = vld [vmem:[%s6 + $0x8] sm:$0xff]
    %v1120 = vld [vmem:[%s6 + $0x10] sm:$0xff]
    %v1121 = vld [vmem:[%s6 + $0x18] sm:$0xff]
    %v1122 = vld [vmem:[%s7] sm:$0x1]
    %v1123 = vld [vmem:[#allocation2] sm:$0xff]
    %v1124 = vld [vmem:[#allocation2 + $0x8] sm:$0xff]
    %v1126 = vlaneseq
    %v1127 = vshrl.u32 %v1126, 7
    %v1128 = vsub.s32 0, %v1127
    %v1129 = vrot.slane %v1122, %v1128
    %v1132 = vsel %vm151, %v1123, 0
    %v1135 = vsel %vm151, %v1124, 0
    %1137 = vmatprep.subr.mxu0 0.0
    %1138 = vmatpush1.msra.mxu0 0.0
    %1139 = vmatprep.subr.mxu0 0.0
    %1140 = vmatpush1.msra.mxu0 0.0
    %1141 = vmatprep.subr.mxu0 0.0
    %1142 = vmatpush1.msra.mxu0 0.0
    %1143 = vmatprep.subr.mxu0 0.0
    %1144 = vmatpush1.msra.mxu0 0.0
    %1145 = vmatprep.subr.mxu0 0.0
    %1146 = vmatpush1.msra.mxu0 0.0
    %1147 = vmatprep.subr.mxu0 0.0
    %1148 = vmatpush1.msra.mxu0 0.0
    %1149 = vmatprep.subr.mxu0 0.0
    %1150 = vmatpush1.msra.mxu0 0.0
    %1151 = vmatprep.subr.mxu0 0.0
    %1152 = vmatpush1.msra.mxu0 0.0
    %1153 = vmatprep.subr.mxu0 0.0
    %1154 = vmatpush1.msra.mxu0 0.0
    %1155 = vmatprep.subr.mxu0 0.0
    %1156 = vmatpush1.msra.mxu0 0.0
    %1157 = vmatprep.subr.mxu0 0.0
    %1158 = vmatpush1.msra.mxu0 0.0
    %1159 = vmatprep.subr.mxu0 0.0
    %1160 = vmatpush1.msra.mxu0 0.0
    %1161 = vmatprep.subr.mxu0 0.0
    %1162 = vmatpush1.msra.mxu0 %v1117
    %1163 = vmatprep.subr.mxu0 0.0
    %1164 = vmatpush1.msra.mxu0 %v1116
    %1165 = vmatprep.subr.mxu0 0.0
    %1166 = vmatpush1.msra.mxu0 %v1115
    %1167 = vmatprep.subr.mxu0 0.0
    %1168 = vmatpush1.msra.mxu0 %v1114
    %1169 = vmatprep.subr.mxu0 0.0
    %1170 = vmatpush2.msra.mxu0 0.0
    %1171 = vmatprep.subr.mxu0 0.0
    %1172 = vmatpush2.msra.mxu0 0.0
    %1173 = vmatprep.subr.mxu0 0.0
    %1174 = vmatpush2.msra.mxu0 0.0
    %1175 = vmatprep.subr.mxu0 0.0
    %1176 = vmatpush2.msra.mxu0 0.0
    %1177 = vmatprep.subr.mxu0 0.0
    %1178 = vmatpush2.msra.mxu0 0.0
    %1179 = vmatprep.subr.mxu0 0.0
    %1180 = vmatpush2.msra.mxu0 0.0
    %1181 = vmatprep.subr.mxu0 0.0
    %1182 = vmatpush2.msra.mxu0 0.0
    %1183 = vmatprep.subr.mxu0 0.0
    %1184 = vmatpush2.msra.mxu0 0.0
    %1185 = vmatprep.subr.mxu0 0.0
    %1186 = vmatpush2.msra.mxu0 0.0
    %1187 = vmatprep.subr.mxu0 0.0
    %1188 = vmatpush2.msra.mxu0 0.0
    %1189 = vmatprep.subr.mxu0 0.0
    %1190 = vmatpush2.msra.mxu0 0.0
    %1191 = vmatprep.subr.mxu0 0.0
    %1192 = vmatpush2.msra.mxu0 0.0
    %1193 = vmatprep.subr.mxu0 0.0
    %1194 = vmatpush2.msra.mxu0 0.0
    %1195 = vmatprep.subr.mxu0 0.0
    %1196 = vmatpush2.msra.mxu0 0.0
    %1197 = vmatprep.subr.mxu0 0.0
    %1198 = vmatpush2.msra.mxu0 0.0
    %1199 = vmatprep.subr.mxu0 0.0
    %1200 = vmatpush2.msra.mxu0 0.0
    %1201 = vmatprep.mubr.f32.mxu0 0.0
    %1202 = vmatmul.mubr.f32.gmra.mxu0 %v1132
    %v1203 = vpop.f32.mrf.mxu0
    %v1204 = vadd.f32 %v1129, %v1203
    %v1205 = vpop.f32.mrf.mxu0
    %1206 = vmatprep.mubr.f32.mxu0 0.0
    %1207 = vmatmul.mubr.f32.gmra.mxu0 %v1135
    %v1208 = vpop.f32.mrf.mxu0
    %v1209 = vadd.f32 %v1129, %v1208
    %v1210 = vpop.f32.mrf.mxu0
    %1211 = vdwg.mxu0
    %1212 = vmatprep.subr.mxu0 0.0
    %1213 = vmatpush1.msra.mxu0 0.0
    %1214 = vmatprep.subr.mxu0 0.0
    %1215 = vmatpush1.msra.mxu0 0.0
    %1216 = vmatprep.subr.mxu0 0.0
    %1217 = vmatpush1.msra.mxu0 0.0
    %1218 = vmatprep.subr.mxu0 0.0
    %1219 = vmatpush1.msra.mxu0 0.0
    %1220 = vmatprep.subr.mxu0 0.0
    %1221 = vmatpush1.msra.mxu0 0.0
    %1222 = vmatprep.subr.mxu0 0.0
    %1223 = vmatpush1.msra.mxu0 0.0
    %1224 = vmatprep.subr.mxu0 0.0
    %1225 = vmatpush1.msra.mxu0 0.0
    %1226 = vmatprep.subr.mxu0 0.0
    %1227 = vmatpush1.msra.mxu0 0.0
    %1228 = vmatprep.subr.mxu0 0.0
    %1229 = vmatpush1.msra.mxu0 0.0
    %1230 = vmatprep.subr.mxu0 0.0
    %1231 = vmatpush1.msra.mxu0 0.0
    %1232 = vmatprep.subr.mxu0 0.0
    %1233 = vmatpush1.msra.mxu0 0.0
    %1234 = vmatprep.subr.mxu0 0.0
    %1235 = vmatpush1.msra.mxu0 0.0
    %1236 = vmatprep.subr.mxu0 0.0
    %1237 = vmatpush1.msra.mxu0 %v1121
    %1238 = vmatprep.subr.mxu0 0.0
    %1239 = vmatpush1.msra.mxu0 %v1120
    %1240 = vmatprep.subr.mxu0 0.0
    %1241 = vmatpush1.msra.mxu0 %v1119
    %1242 = vmatprep.subr.mxu0 0.0
    %1243 = vmatpush1.msra.mxu0 %v1118
    %1244 = vmatprep.subr.mxu0 0.0
    %1245 = vmatpush2.msra.mxu0 0.0
    %1246 = vmatprep.subr.mxu0 0.0
    %1247 = vmatpush2.msra.mxu0 0.0
    %1248 = vmatprep.subr.mxu0 0.0
    %1249 = vmatpush2.msra.mxu0 0.0
    %1250 = vmatprep.subr.mxu0 0.0
    %1251 = vmatpush2.msra.mxu0 0.0
    %1252 = vmatprep.subr.mxu0 0.0
    %1253 = vmatpush2.msra.mxu0 0.0
    %1254 = vmatprep.subr.mxu0 0.0
    %1255 = vmatpush2.msra.mxu0 0.0
    %1256 = vmatprep.subr.mxu0 0.0
    %1257 = vmatpush2.msra.mxu0 0.0
    %1258 = vmatprep.subr.mxu0 0.0
    %1259 = vmatpush2.msra.mxu0 0.0
    %1260 = vmatprep.subr.mxu0 0.0
    %1261 = vmatpush2.msra.mxu0 0.0
    %1262 = vmatprep.subr.mxu0 0.0
    %1263 = vmatpush2.msra.mxu0 0.0
    %1264 = vmatprep.subr.mxu0 0.0
    %1265 = vmatpush2.msra.mxu0 0.0
    %1266 = vmatprep.subr.mxu0 0.0
    %1267 = vmatpush2.msra.mxu0 0.0
    %1268 = vmatprep.subr.mxu0 0.0
    %1269 = vmatpush2.msra.mxu0 0.0
    %1270 = vmatprep.subr.mxu0 0.0
    %1271 = vmatpush2.msra.mxu0 0.0
    %1272 = vmatprep.subr.mxu0 0.0
    %1273 = vmatpush2.msra.mxu0 0.0
    %1274 = vmatprep.subr.mxu0 0.0
    %1275 = vmatpush2.msra.mxu0 0.0
    %1276 = vmatprep.mubr.f32.mxu0 0.0
    %1277 = vmatmul.mubr.f32.gmra.mxu0 %v234
    %v1278 = vpop.f32.mrf.mxu0
    %v1279 = vadd.f32 0.0, %v1278
    %v1280 = vpop.f32.mrf.mxu0
    %1281 = vdwg.mxu0
    %v1282 = vadd.f32 %v1204, %v1279
    %v1283 = vxor.u32 %v1282, 2147483648
    %v1284 = vmul.f32 %v1283, 1.442695
    %v1285 = vpow.pop %v1284
    %v1286 = vadd.f32 %v1285, 1.0
    %v1287 = vrcp.pop %v1286
    %v1288 = vmul.f32 1.0, %v1287
    %v1289 = vtanh.pop %v1282
    %v1290 = vmul.f32 %v1288, 0.0
    %1292 = vrot.lane.b32.xlu0 %v1289, 32
    %v1293 = vpop.permute.xlu0 %1292
    %v1295 = vmul.f32 %v1288, %v1293
    %1297 = vrot.lane.b32.xlu0 %v1295, 32
    %v1298 = vpop.permute.xlu0 %1297
    %v1300 = vadd.f32 %v1290, %v1298
    %v1301 = vtanh.pop %v1300
    %1303 = vrot.lane.b32.xlu0 %v1301, 32
    %v1304 = vpop.permute.xlu0 %1303
    %v1306 = vmul.f32 %v1288, %v1304
    %1308 = vrot.lane.b32.xlu0 %v1306, 64
    %v1309 = vpop.permute.xlu0 %1308
    %v1310 = vsel %vm151, %v1309, 0
    %1312 = vmatprep.subr.mxu0 0.0
    %1313 = vmatpush1.msra.mxu0 0.0
    %1314 = vmatprep.subr.mxu0 0.0
    %1315 = vmatpush1.msra.mxu0 0.0
    %1316 = vmatprep.subr.mxu0 0.0
    %1317 = vmatpush1.msra.mxu0 0.0
    %1318 = vmatprep.subr.mxu0 0.0
    %1319 = vmatpush1.msra.mxu0 0.0
    %1320 = vmatprep.subr.mxu0 0.0
    %1321 = vmatpush1.msra.mxu0 0.0
    %1322 = vmatprep.subr.mxu0 0.0
    %1323 = vmatpush1.msra.mxu0 0.0
    %1324 = vmatprep.subr.mxu0 0.0
    %1325 = vmatpush1.msra.mxu0 0.0
    %1326 = vmatprep.subr.mxu0 0.0
    %1327 = vmatpush1.msra.mxu0 0.0
    %1328 = vmatprep.subr.mxu0 0.0
    %1329 = vmatpush1.msra.mxu0 0.0
    %1330 = vmatprep.subr.mxu0 0.0
    %1331 = vmatpush1.msra.mxu0 0.0
    %1332 = vmatprep.subr.mxu0 0.0
    %1333 = vmatpush1.msra.mxu0 0.0
    %1334 = vmatprep.subr.mxu0 0.0
    %1335 = vmatpush1.msra.mxu0 0.0
    %1336 = vmatprep.subr.mxu0 0.0
    %1337 = vmatpush1.msra.mxu0 %v1121
    %1338 = vmatprep.subr.mxu0 0.0
    %1339 = vmatpush1.msra.mxu0 %v1120
    %1340 = vmatprep.subr.mxu0 0.0
    %1341 = vmatpush1.msra.mxu0 %v1119
    %1342 = vmatprep.subr.mxu0 0.0
    %1343 = vmatpush1.msra.mxu0 %v1118
    %1344 = vmatprep.subr.mxu0 0.0
    %1345 = vmatpush2.msra.mxu0 0.0
    %1346 = vmatprep.subr.mxu0 0.0
    %1347 = vmatpush2.msra.mxu0 0.0
    %1348 = vmatprep.subr.mxu0 0.0
    %1349 = vmatpush2.msra.mxu0 0.0
    %1350 = vmatprep.subr.mxu0 0.0
    %1351 = vmatpush2.msra.mxu0 0.0
    %1352 = vmatprep.subr.mxu0 0.0
    %1353 = vmatpush2.msra.mxu0 0.0
    %1354 = vmatprep.subr.mxu0 0.0
    %1355 = vmatpush2.msra.mxu0 0.0
    %1356 = vmatprep.subr.mxu0 0.0
    %1357 = vmatpush2.msra.mxu0 0.0
    %1358 = vmatprep.subr.mxu0 0.0
    %1359 = vmatpush2.msra.mxu0 0.0
    %1360 = vmatprep.subr.mxu0 0.0
    %1361 = vmatpush2.msra.mxu0 0.0
    %1362 = vmatprep.subr.mxu0 0.0
    %1363 = vmatpush2.msra.mxu0 0.0
    %1364 = vmatprep.subr.mxu0 0.0
    %1365 = vmatpush2.msra.mxu0 0.0
    %1366 = vmatprep.subr.mxu0 0.0
    %1367 = vmatpush2.msra.mxu0 0.0
    %1368 = vmatprep.subr.mxu0 0.0
    %1369 = vmatpush2.msra.mxu0 0.0
    %1370 = vmatprep.subr.mxu0 0.0
    %1371 = vmatpush2.msra.mxu0 0.0
    %1372 = vmatprep.subr.mxu0 0.0
    %1373 = vmatpush2.msra.mxu0 0.0
    %1374 = vmatprep.subr.mxu0 0.0
    %1375 = vmatpush2.msra.mxu0 0.0
    %1376 = vmatprep.mubr.f32.mxu0 0.0
    %1377 = vmatmul.mubr.f32.gmra.mxu0 %v1310
    %v1378 = vpop.f32.mrf.mxu0
    %v1379 = vadd.f32 0.0, %v1378
    %v1380 = vpop.f32.mrf.mxu0
    %1381 = vdwg.mxu0
    %v1383 = vrot.slane %v1379, 6
    %v1385 = vadd.f32 %v1204, %v1383
    %v1386 = vxor.u32 %v1385, 2147483648
    %v1387 = vmul.f32 %v1386, 1.442695
    %v1388 = vpow.pop %v1387
    %v1389 = vadd.f32 %v1388, 1.0
    %v1390 = vrcp.pop %v1389
    %v1391 = vmul.f32 1.0, %v1390
    %v1392 = vtanh.pop %v1385
    %v1394 = vrot.slane %v1300, 6
    %v1396 = vmul.f32 %v1391, %v1394
    %1398 = vrot.lane.b32.xlu0 %v1392, 32
    %v1399 = vpop.permute.xlu0 %1398
    %v1401 = vmul.f32 %v1391, %v1399
    %1403 = vrot.lane.b32.xlu0 %v1401, 32
    %v1404 = vpop.permute.xlu0 %1403
    %v1406 = vadd.f32 %v1396, %v1404
    %v1407 = vtanh.pop %v1406
    %1409 = vrot.lane.b32.xlu0 %v1407, 32
    %v1410 = vpop.permute.xlu0 %1409
    %v1412 = vmul.f32 %v1391, %v1410
    %v1414 = vrot.slane %v1412, 2
    %1415 = vrot.lane.b32.xlu0 %v1414, 64
    %v1416 = vpop.permute.xlu0 %1415
    %v1417 = vsel %vm151, %v1416, 0
    %1419 = vmatprep.subr.mxu0 0.0
    %1420 = vmatpush1.msra.mxu0 0.0
    %1421 = vmatprep.subr.mxu0 0.0
    %1422 = vmatpush1.msra.mxu0 0.0
    %1423 = vmatprep.subr.mxu0 0.0
    %1424 = vmatpush1.msra.mxu0 0.0
    %1425 = vmatprep.subr.mxu0 0.0
    %1426 = vmatpush1.msra.mxu0 0.0
    %1427 = vmatprep.subr.mxu0 0.0
    %1428 = vmatpush1.msra.mxu0 0.0
    %1429 = vmatprep.subr.mxu0 0.0
    %1430 = vmatpush1.msra.mxu0 0.0
    %1431 = vmatprep.subr.mxu0 0.0
    %1432 = vmatpush1.msra.mxu0 0.0
    %1433 = vmatprep.subr.mxu0 0.0
    %1434 = vmatpush1.msra.mxu0 0.0
    %1435 = vmatprep.subr.mxu0 0.0
    %1436 = vmatpush1.msra.mxu0 0.0
    %1437 = vmatprep.subr.mxu0 0.0
    %1438 = vmatpush1.msra.mxu0 0.0
    %1439 = vmatprep.subr.mxu0 0.0
    %1440 = vmatpush1.msra.mxu0 0.0
    %1441 = vmatprep.subr.mxu0 0.0
    %1442 = vmatpush1.msra.mxu0 0.0
    %1443 = vmatprep.subr.mxu0 0.0
    %1444 = vmatpush1.msra.mxu0 %v1121
    %1445 = vmatprep.subr.mxu0 0.0
    %1446 = vmatpush1.msra.mxu0 %v1120
    %1447 = vmatprep.subr.mxu0 0.0
    %1448 = vmatpush1.msra.mxu0 %v1119
    %1449 = vmatprep.subr.mxu0 0.0
    %1450 = vmatpush1.msra.mxu0 %v1118
    %1451 = vmatprep.subr.mxu0 0.0
    %1452 = vmatpush2.msra.mxu0 0.0
    %1453 = vmatprep.subr.mxu0 0.0
    %1454 = vmatpush2.msra.mxu0 0.0
    %1455 = vmatprep.subr.mxu0 0.0
    %1456 = vmatpush2.msra.mxu0 0.0
    %1457 = vmatprep.subr.mxu0 0.0
    %1458 = vmatpush2.msra.mxu0 0.0
    %1459 = vmatprep.subr.mxu0 0.0
    %1460 = vmatpush2.msra.mxu0 0.0
    %1461 = vmatprep.subr.mxu0 0.0
    %1462 = vmatpush2.msra.mxu0 0.0
    %1463 = vmatprep.subr.mxu0 0.0
    %1464 = vmatpush2.msra.mxu0 0.0
    %1465 = vmatprep.subr.mxu0 0.0
    %1466 = vmatpush2.msra.mxu0 0.0
    %1467 = vmatprep.subr.mxu0 0.0
    %1468 = vmatpush2.msra.mxu0 0.0
    %1469 = vmatprep.subr.mxu0 0.0
    %1470 = vmatpush2.msra.mxu0 0.0
    %1471 = vmatprep.subr.mxu0 0.0
    %1472 = vmatpush2.msra.mxu0 0.0
    %1473 = vmatprep.subr.mxu0 0.0
    %1474 = vmatpush2.msra.mxu0 0.0
    %1475 = vmatprep.subr.mxu0 0.0
    %1476 = vmatpush2.msra.mxu0 0.0
    %1477 = vmatprep.subr.mxu0 0.0
    %1478 = vmatpush2.msra.mxu0 0.0
    %1479 = vmatprep.subr.mxu0 0.0
    %1480 = vmatpush2.msra.mxu0 0.0
    %1481 = vmatprep.subr.mxu0 0.0
    %1482 = vmatpush2.msra.mxu0 0.0
    %1483 = vmatprep.mubr.f32.mxu0 0.0
    %1484 = vmatmul.mubr.f32.gmra.mxu0 %v1417
    %v1485 = vpop.f32.mrf.mxu0
    %v1486 = vadd.f32 0.0, %v1485
    %v1487 = vpop.f32.mrf.mxu0
    %1488 = vdwg.mxu0
    %v1490 = vrot.slane %v1486, 4
    %v1492 = vadd.f32 %v1204, %v1490
    %v1493 = vxor.u32 %v1492, 2147483648
    %v1494 = vmul.f32 %v1493, 1.442695
    %v1495 = vpow.pop %v1494
    %v1496 = vadd.f32 %v1495, 1.0
    %v1497 = vrcp.pop %v1496
    %v1498 = vmul.f32 1.0, %v1497
    %v1499 = vtanh.pop %v1492
    %v1501 = vrot.slane %v1406, 6
    %v1503 = vmul.f32 %v1498, %v1501
    %1505 = vrot.lane.b32.xlu0 %v1499, 32
    %v1506 = vpop.permute.xlu0 %1505
    %v1508 = vmul.f32 %v1498, %v1506
    %1510 = vrot.lane.b32.xlu0 %v1508, 32
    %v1511 = vpop.permute.xlu0 %1510
    %v1513 = vadd.f32 %v1503, %v1511
    %v1514 = vtanh.pop %v1513
    %1516 = vrot.lane.b32.xlu0 %v1514, 32
    %v1517 = vpop.permute.xlu0 %1516
    %v1519 = vmul.f32 %v1498, %v1517
    %v1521 = vrot.slane %v1519, 4
    %1522 = vrot.lane.b32.xlu0 %v1521, 64
    %v1523 = vpop.permute.xlu0 %1522
    %v1524 = vsel %vm151, %v1523, 0
    %1526 = vmatprep.subr.mxu0 0.0
    %1527 = vmatpush1.msra.mxu0 0.0
    %1528 = vmatprep.subr.mxu0 0.0
    %1529 = vmatpush1.msra.mxu0 0.0
    %1530 = vmatprep.subr.mxu0 0.0
    %1531 = vmatpush1.msra.mxu0 0.0
    %1532 = vmatprep.subr.mxu0 0.0
    %1533 = vmatpush1.msra.mxu0 0.0
    %1534 = vmatprep.subr.mxu0 0.0
    %1535 = vmatpush1.msra.mxu0 0.0
    %1536 = vmatprep.subr.mxu0 0.0
    %1537 = vmatpush1.msra.mxu0 0.0
    %1538 = vmatprep.subr.mxu0 0.0
    %1539 = vmatpush1.msra.mxu0 0.0
    %1540 = vmatprep.subr.mxu0 0.0
    %1541 = vmatpush1.msra.mxu0 0.0
    %1542 = vmatprep.subr.mxu0 0.0
    %1543 = vmatpush1.msra.mxu0 0.0
    %1544 = vmatprep.subr.mxu0 0.0
    %1545 = vmatpush1.msra.mxu0 0.0
    %1546 = vmatprep.subr.mxu0 0.0
    %1547 = vmatpush1.msra.mxu0 0.0
    %1548 = vmatprep.subr.mxu0 0.0
    %1549 = vmatpush1.msra.mxu0 0.0
    %1550 = vmatprep.subr.mxu0 0.0
    %1551 = vmatpush1.msra.mxu0 %v1121
    %1552 = vmatprep.subr.mxu0 0.0
    %1553 = vmatpush1.msra.mxu0 %v1120
    %1554 = vmatprep.subr.mxu0 0.0
    %1555 = vmatpush1.msra.mxu0 %v1119
    %1556 = vmatprep.subr.mxu0 0.0
    %1557 = vmatpush1.msra.mxu0 %v1118
    %1558 = vmatprep.subr.mxu0 0.0
    %1559 = vmatpush2.msra.mxu0 0.0
    %1560 = vmatprep.subr.mxu0 0.0
    %1561 = vmatpush2.msra.mxu0 0.0
    %1562 = vmatprep.subr.mxu0 0.0
    %1563 = vmatpush2.msra.mxu0 0.0
    %1564 = vmatprep.subr.mxu0 0.0
    %1565 = vmatpush2.msra.mxu0 0.0
    %1566 = vmatprep.subr.mxu0 0.0
    %1567 = vmatpush2.msra.mxu0 0.0
    %1568 = vmatprep.subr.mxu0 0.0
    %1569 = vmatpush2.msra.mxu0 0.0
    %1570 = vmatprep.subr.mxu0 0.0
    %1571 = vmatpush2.msra.mxu0 0.0
    %1572 = vmatprep.subr.mxu0 0.0
    %1573 = vmatpush2.msra.mxu0 0.0
    %1574 = vmatprep.subr.mxu0 0.0
    %1575 = vmatpush2.msra.mxu0 0.0
    %1576 = vmatprep.subr.mxu0 0.0
    %1577 = vmatpush2.msra.mxu0 0.0
    %1578 = vmatprep.subr.mxu0 0.0
    %1579 = vmatpush2.msra.mxu0 0.0
    %1580 = vmatprep.subr.mxu0 0.0
    %1581 = vmatpush2.msra.mxu0 0.0
    %1582 = vmatprep.subr.mxu0 0.0
    %1583 = vmatpush2.msra.mxu0 0.0
    %1584 = vmatprep.subr.mxu0 0.0
    %1585 = vmatpush2.msra.mxu0 0.0
    %1586 = vmatprep.subr.mxu0 0.0
    %1587 = vmatpush2.msra.mxu0 0.0
    %1588 = vmatprep.subr.mxu0 0.0
    %1589 = vmatpush2.msra.mxu0 0.0
    %1590 = vmatprep.mubr.f32.mxu0 0.0
    %1591 = vmatmul.mubr.f32.gmra.mxu0 %v1524
    %v1592 = vpop.f32.mrf.mxu0
    %v1593 = vadd.f32 0.0, %v1592
    %v1594 = vpop.f32.mrf.mxu0
    %1595 = vdwg.mxu0
    %v1597 = vrot.slane %v1593, 2
    %v1599 = vadd.f32 %v1204, %v1597
    %v1600 = vxor.u32 %v1599, 2147483648
    %v1601 = vmul.f32 %v1600, 1.442695
    %v1602 = vpow.pop %v1601
    %v1603 = vadd.f32 %v1602, 1.0
    %v1604 = vrcp.pop %v1603
    %v1605 = vmul.f32 1.0, %v1604
    %v1606 = vtanh.pop %v1599
    %v1608 = vrot.slane %v1513, 6
    %v1610 = vmul.f32 %v1605, %v1608
    %1612 = vrot.lane.b32.xlu0 %v1606, 32
    %v1613 = vpop.permute.xlu0 %1612
    %v1615 = vmul.f32 %v1605, %v1613
    %1617 = vrot.lane.b32.xlu0 %v1615, 32
    %v1618 = vpop.permute.xlu0 %1617
    %v1620 = vadd.f32 %v1610, %v1618
    %v1621 = vtanh.pop %v1620
    %1623 = vrot.lane.b32.xlu0 %v1621, 32
    %v1624 = vpop.permute.xlu0 %1623
    %v1626 = vmul.f32 %v1605, %v1624
    %v1628 = vrot.slane %v1626, 6
    %1629 = vrot.lane.b32.xlu0 %v1628, 64
    %v1630 = vpop.permute.xlu0 %1629
    %v1631 = vsel %vm151, %v1630, 0
    %1633 = vmatprep.subr.mxu0 0.0
    %1634 = vmatpush1.msra.mxu0 0.0
    %1635 = vmatprep.subr.mxu0 0.0
    %1636 = vmatpush1.msra.mxu0 0.0
    %1637 = vmatprep.subr.mxu0 0.0
    %1638 = vmatpush1.msra.mxu0 0.0
    %1639 = vmatprep.subr.mxu0 0.0
    %1640 = vmatpush1.msra.mxu0 0.0
    %1641 = vmatprep.subr.mxu0 0.0
    %1642 = vmatpush1.msra.mxu0 0.0
    %1643 = vmatprep.subr.mxu0 0.0
    %1644 = vmatpush1.msra.mxu0 0.0
    %1645 = vmatprep.subr.mxu0 0.0
    %1646 = vmatpush1.msra.mxu0 0.0
    %1647 = vmatprep.subr.mxu0 0.0
    %1648 = vmatpush1.msra.mxu0 0.0
    %1649 = vmatprep.subr.mxu0 0.0
    %1650 = vmatpush1.msra.mxu0 0.0
    %1651 = vmatprep.subr.mxu0 0.0
    %1652 = vmatpush1.msra.mxu0 0.0
    %1653 = vmatprep.subr.mxu0 0.0
    %1654 = vmatpush1.msra.mxu0 0.0
    %1655 = vmatprep.subr.mxu0 0.0
    %1656 = vmatpush1.msra.mxu0 0.0
    %1657 = vmatprep.subr.mxu0 0.0
    %1658 = vmatpush1.msra.mxu0 %v1121
    %1659 = vmatprep.subr.mxu0 0.0
    %1660 = vmatpush1.msra.mxu0 %v1120
    %1661 = vmatprep.subr.mxu0 0.0
    %1662 = vmatpush1.msra.mxu0 %v1119
    %1663 = vmatprep.subr.mxu0 0.0
    %1664 = vmatpush1.msra.mxu0 %v1118
    %1665 = vmatprep.subr.mxu0 0.0
    %1666 = vmatpush2.msra.mxu0 0.0
    %1667 = vmatprep.subr.mxu0 0.0
    %1668 = vmatpush2.msra.mxu0 0.0
    %1669 = vmatprep.subr.mxu0 0.0
    %1670 = vmatpush2.msra.mxu0 0.0
    %1671 = vmatprep.subr.mxu0 0.0
    %1672 = vmatpush2.msra.mxu0 0.0
    %1673 = vmatprep.subr.mxu0 0.0
    %1674 = vmatpush2.msra.mxu0 0.0
    %1675 = vmatprep.subr.mxu0 0.0
    %1676 = vmatpush2.msra.mxu0 0.0
    %1677 = vmatprep.subr.mxu0 0.0
    %1678 = vmatpush2.msra.mxu0 0.0
    %1679 = vmatprep.subr.mxu0 0.0
    %1680 = vmatpush2.msra.mxu0 0.0
    %1681 = vmatprep.subr.mxu0 0.0
    %1682 = vmatpush2.msra.mxu0 0.0
    %1683 = vmatprep.subr.mxu0 0.0
    %1684 = vmatpush2.msra.mxu0 0.0
    %1685 = vmatprep.subr.mxu0 0.0
    %1686 = vmatpush2.msra.mxu0 0.0
    %1687 = vmatprep.subr.mxu0 0.0
    %1688 = vmatpush2.msra.mxu0 0.0
    %1689 = vmatprep.subr.mxu0 0.0
    %1690 = vmatpush2.msra.mxu0 0.0
    %1691 = vmatprep.subr.mxu0 0.0
    %1692 = vmatpush2.msra.mxu0 0.0
    %1693 = vmatprep.subr.mxu0 0.0
    %1694 = vmatpush2.msra.mxu0 0.0
    %1695 = vmatprep.subr.mxu0 0.0
    %1696 = vmatpush2.msra.mxu0 0.0
    %1697 = vmatprep.mubr.f32.mxu0 0.0
    %1698 = vmatmul.mubr.f32.gmra.mxu0 %v1631
    %v1699 = vpop.f32.mrf.mxu0
    %v1700 = vadd.f32 0.0, %v1699
    %v1701 = vpop.f32.mrf.mxu0
    %1702 = vdwg.mxu0
    %v1703 = vadd.f32 %v1209, %v1700
    %v1704 = vxor.u32 %v1703, 2147483648
    %v1705 = vmul.f32 %v1704, 1.442695
    %v1706 = vpow.pop %v1705
    %v1707 = vadd.f32 %v1706, 1.0
    %v1708 = vrcp.pop %v1707
    %v1709 = vmul.f32 1.0, %v1708
    %v1710 = vtanh.pop %v1703
    %v1712 = vrot.slane %v1620, 6
    %v1714 = vmul.f32 %v1709, %v1712
    %1716 = vrot.lane.b32.xlu0 %v1710, 32
    %v1717 = vpop.permute.xlu0 %1716
    %v1719 = vmul.f32 %v1709, %v1717
    %1721 = vrot.lane.b32.xlu0 %v1719, 32
    %v1722 = vpop.permute.xlu0 %1721
    %v1724 = vadd.f32 %v1714, %v1722
    %v1725 = vtanh.pop %v1724
    %1727 = vrot.lane.b32.xlu0 %v1725, 32
    %v1728 = vpop.permute.xlu0 %1727
    %v1730 = vmul.f32 %v1709, %v1728
    %1732 = vrot.lane.b32.xlu0 %v1730, 64
    %v1733 = vpop.permute.xlu0 %1732
    %v1734 = vsel %vm151, %v1733, 0
    %1736 = vmatprep.subr.mxu0 0.0
    %1737 = vmatpush1.msra.mxu0 0.0
    %1738 = vmatprep.subr.mxu0 0.0
    %1739 = vmatpush1.msra.mxu0 0.0
    %1740 = vmatprep.subr.mxu0 0.0
    %1741 = vmatpush1.msra.mxu0 0.0
    %1742 = vmatprep.subr.mxu0 0.0
    %1743 = vmatpush1.msra.mxu0 0.0
    %1744 = vmatprep.subr.mxu0 0.0
    %1745 = vmatpush1.msra.mxu0 0.0
    %1746 = vmatprep.subr.mxu0 0.0
    %1747 = vmatpush1.msra.mxu0 0.0
    %1748 = vmatprep.subr.mxu0 0.0
    %1749 = vmatpush1.msra.mxu0 0.0
    %1750 = vmatprep.subr.mxu0 0.0
    %1751 = vmatpush1.msra.mxu0 0.0
    %1752 = vmatprep.subr.mxu0 0.0
    %1753 = vmatpush1.msra.mxu0 0.0
    %1754 = vmatprep.subr.mxu0 0.0
    %1755 = vmatpush1.msra.mxu0 0.0
    %1756 = vmatprep.subr.mxu0 0.0
    %1757 = vmatpush1.msra.mxu0 0.0
    %1758 = vmatprep.subr.mxu0 0.0
    %1759 = vmatpush1.msra.mxu0 0.0
    %1760 = vmatprep.subr.mxu0 0.0
    %1761 = vmatpush1.msra.mxu0 %v1121
    %1762 = vmatprep.subr.mxu0 0.0
    %1763 = vmatpush1.msra.mxu0 %v1120
    %1764 = vmatprep.subr.mxu0 0.0
    %1765 = vmatpush1.msra.mxu0 %v1119
    %1766 = vmatprep.subr.mxu0 0.0
    %1767 = vmatpush1.msra.mxu0 %v1118
    %1768 = vmatprep.subr.mxu0 0.0
    %1769 = vmatpush2.msra.mxu0 0.0
    %1770 = vmatprep.subr.mxu0 0.0
    %1771 = vmatpush2.msra.mxu0 0.0
    %1772 = vmatprep.subr.mxu0 0.0
    %1773 = vmatpush2.msra.mxu0 0.0
    %1774 = vmatprep.subr.mxu0 0.0
    %1775 = vmatpush2.msra.mxu0 0.0
    %1776 = vmatprep.subr.mxu0 0.0
    %1777 = vmatpush2.msra.mxu0 0.0
    %1778 = vmatprep.subr.mxu0 0.0
    %1779 = vmatpush2.msra.mxu0 0.0
    %1780 = vmatprep.subr.mxu0 0.0
    %1781 = vmatpush2.msra.mxu0 0.0
    %1782 = vmatprep.subr.mxu0 0.0
    %1783 = vmatpush2.msra.mxu0 0.0
    %1784 = vmatprep.subr.mxu0 0.0
    %1785 = vmatpush2.msra.mxu0 0.0
    %1786 = vmatprep.subr.mxu0 0.0
    %1787 = vmatpush2.msra.mxu0 0.0
    %1788 = vmatprep.subr.mxu0 0.0
    %1789 = vmatpush2.msra.mxu0 0.0
    %1790 = vmatprep.subr.mxu0 0.0
    %1791 = vmatpush2.msra.mxu0 0.0
    %1792 = vmatprep.subr.mxu0 0.0
    %1793 = vmatpush2.msra.mxu0 0.0
    %1794 = vmatprep.subr.mxu0 0.0
    %1795 = vmatpush2.msra.mxu0 0.0
    %1796 = vmatprep.subr.mxu0 0.0
    %1797 = vmatpush2.msra.mxu0 0.0
    %1798 = vmatprep.subr.mxu0 0.0
    %1799 = vmatpush2.msra.mxu0 0.0
    %1800 = vmatprep.mubr.f32.mxu0 0.0
    %1801 = vmatmul.mubr.f32.gmra.mxu0 %v1734
    %v1802 = vpop.f32.mrf.mxu0
    %v1803 = vadd.f32 0.0, %v1802
    %v1804 = vpop.f32.mrf.mxu0
    %1805 = vdwg.mxu0
    %v1807 = vrot.slane %v1803, 6
    %v1809 = vadd.f32 %v1209, %v1807
    %v1810 = vxor.u32 %v1809, 2147483648
    %v1811 = vmul.f32 %v1810, 1.442695
    %v1812 = vpow.pop %v1811
    %v1813 = vadd.f32 %v1812, 1.0
    %v1814 = vrcp.pop %v1813
    %v1815 = vmul.f32 1.0, %v1814
    %v1816 = vtanh.pop %v1809
    %v1818 = vrot.slane %v1724, 6
    %v1820 = vmul.f32 %v1815, %v1818
    %1822 = vrot.lane.b32.xlu0 %v1816, 32
    %v1823 = vpop.permute.xlu0 %1822
    %v1825 = vmul.f32 %v1815, %v1823
    %1827 = vrot.lane.b32.xlu0 %v1825, 32
    %v1828 = vpop.permute.xlu0 %1827
    %v1830 = vadd.f32 %v1820, %v1828
    %v1831 = vtanh.pop %v1830
    %1833 = vrot.lane.b32.xlu0 %v1831, 32
    %v1834 = vpop.permute.xlu0 %1833
    %v1836 = vmul.f32 %v1815, %v1834
    %v1838 = vrot.slane %v1836, 2
    %1839 = vrot.lane.b32.xlu0 %v1838, 64
    %v1840 = vpop.permute.xlu0 %1839
    %v1841 = vsel %vm151, %v1840, 0
    %1843 = vmatprep.subr.mxu0 0.0
    %1844 = vmatpush1.msra.mxu0 0.0
    %1845 = vmatprep.subr.mxu0 0.0
    %1846 = vmatpush1.msra.mxu0 0.0
    %1847 = vmatprep.subr.mxu0 0.0
    %1848 = vmatpush1.msra.mxu0 0.0
    %1849 = vmatprep.subr.mxu0 0.0
    %1850 = vmatpush1.msra.mxu0 0.0
    %1851 = vmatprep.subr.mxu0 0.0
    %1852 = vmatpush1.msra.mxu0 0.0
    %1853 = vmatprep.subr.mxu0 0.0
    %1854 = vmatpush1.msra.mxu0 0.0
    %1855 = vmatprep.subr.mxu0 0.0
    %1856 = vmatpush1.msra.mxu0 0.0
    %1857 = vmatprep.subr.mxu0 0.0
    %1858 = vmatpush1.msra.mxu0 0.0
    %1859 = vmatprep.subr.mxu0 0.0
    %1860 = vmatpush1.msra.mxu0 0.0
    %1861 = vmatprep.subr.mxu0 0.0
    %1862 = vmatpush1.msra.mxu0 0.0
    %1863 = vmatprep.subr.mxu0 0.0
    %1864 = vmatpush1.msra.mxu0 0.0
    %1865 = vmatprep.subr.mxu0 0.0
    %1866 = vmatpush1.msra.mxu0 0.0
    %1867 = vmatprep.subr.mxu0 0.0
    %1868 = vmatpush1.msra.mxu0 %v1121
    %1869 = vmatprep.subr.mxu0 0.0
    %1870 = vmatpush1.msra.mxu0 %v1120
    %1871 = vmatprep.subr.mxu0 0.0
    %1872 = vmatpush1.msra.mxu0 %v1119
    %1873 = vmatprep.subr.mxu0 0.0
    %1874 = vmatpush1.msra.mxu0 %v1118
    %1875 = vmatprep.subr.mxu0 0.0
    %1876 = vmatpush2.msra.mxu0 0.0
    %1877 = vmatprep.subr.mxu0 0.0
    %1878 = vmatpush2.msra.mxu0 0.0
    %1879 = vmatprep.subr.mxu0 0.0
    %1880 = vmatpush2.msra.mxu0 0.0
    %1881 = vmatprep.subr.mxu0 0.0
    %1882 = vmatpush2.msra.mxu0 0.0
    %1883 = vmatprep.subr.mxu0 0.0
    %1884 = vmatpush2.msra.mxu0 0.0
    %1885 = vmatprep.subr.mxu0 0.0
    %1886 = vmatpush2.msra.mxu0 0.0
    %1887 = vmatprep.subr.mxu0 0.0
    %1888 = vmatpush2.msra.mxu0 0.0
    %1889 = vmatprep.subr.mxu0 0.0
    %1890 = vmatpush2.msra.mxu0 0.0
    %1891 = vmatprep.subr.mxu0 0.0
    %1892 = vmatpush2.msra.mxu0 0.0
    %1893 = vmatprep.subr.mxu0 0.0
    %1894 = vmatpush2.msra.mxu0 0.0
    %1895 = vmatprep.subr.mxu0 0.0
    %1896 = vmatpush2.msra.mxu0 0.0
    %1897 = vmatprep.subr.mxu0 0.0
    %1898 = vmatpush2.msra.mxu0 0.0
    %1899 = vmatprep.subr.mxu0 0.0
    %1900 = vmatpush2.msra.mxu0 0.0
    %1901 = vmatprep.subr.mxu0 0.0
    %1902 = vmatpush2.msra.mxu0 0.0
    %1903 = vmatprep.subr.mxu0 0.0
    %1904 = vmatpush2.msra.mxu0 0.0
    %1905 = vmatprep.subr.mxu0 0.0
    %1906 = vmatpush2.msra.mxu0 0.0
    %1907 = vmatprep.mubr.f32.mxu0 0.0
    %1908 = vmatmul.mubr.f32.gmra.mxu0 %v1841
    %v1909 = vpop.f32.mrf.mxu0
    %v1910 = vadd.f32 0.0, %v1909
    %v1911 = vpop.f32.mrf.mxu0
    %1912 = vdwg.mxu0
    %v1914 = vrot.slane %v1910, 4
    %v1916 = vadd.f32 %v1209, %v1914
    %v1917 = vxor.u32 %v1916, 2147483648
    %v1918 = vmul.f32 %v1917, 1.442695
    %v1919 = vpow.pop %v1918
    %v1920 = vadd.f32 %v1919, 1.0
    %v1921 = vrcp.pop %v1920
    %v1922 = vmul.f32 1.0, %v1921
    %v1923 = vtanh.pop %v1916
    %v1925 = vrot.slane %v1830, 6
    %v1927 = vmul.f32 %v1922, %v1925
    %1929 = vrot.lane.b32.xlu0 %v1923, 32
    %v1930 = vpop.permute.xlu0 %1929
    %v1932 = vmul.f32 %v1922, %v1930
    %1934 = vrot.lane.b32.xlu0 %v1932, 32
    %v1935 = vpop.permute.xlu0 %1934
    %v1937 = vadd.f32 %v1927, %v1935
    %v1938 = vtanh.pop %v1937
    %1940 = vrot.lane.b32.xlu0 %v1938, 32
    %v1941 = vpop.permute.xlu0 %1940
    %v1943 = vmul.f32 %v1922, %v1941
    %v1945 = vrot.slane %v1943, 4
    %1946 = vrot.lane.b32.xlu0 %v1945, 64
    %v1947 = vpop.permute.xlu0 %1946
    %v1948 = vsel %vm151, %v1947, 0
    %1950 = vmatprep.subr.mxu0 0.0
    %1951 = vmatpush1.msra.mxu0 0.0
    %1952 = vmatprep.subr.mxu0 0.0
    %1953 = vmatpush1.msra.mxu0 0.0
    %1954 = vmatprep.subr.mxu0 0.0
    %1955 = vmatpush1.msra.mxu0 0.0
    %1956 = vmatprep.subr.mxu0 0.0
    %1957 = vmatpush1.msra.mxu0 0.0
    %1958 = vmatprep.subr.mxu0 0.0
    %1959 = vmatpush1.msra.mxu0 0.0
    %1960 = vmatprep.subr.mxu0 0.0
    %1961 = vmatpush1.msra.mxu0 0.0
    %1962 = vmatprep.subr.mxu0 0.0
    %1963 = vmatpush1.msra.mxu0 0.0
    %1964 = vmatprep.subr.mxu0 0.0
    %1965 = vmatpush1.msra.mxu0 0.0
    %1966 = vmatprep.subr.mxu0 0.0
    %1967 = vmatpush1.msra.mxu0 0.0
    %1968 = vmatprep.subr.mxu0 0.0
    %1969 = vmatpush1.msra.mxu0 0.0
    %1970 = vmatprep.subr.mxu0 0.0
    %1971 = vmatpush1.msra.mxu0 0.0
    %1972 = vmatprep.subr.mxu0 0.0
    %1973 = vmatpush1.msra.mxu0 0.0
    %1974 = vmatprep.subr.mxu0 0.0
    %1975 = vmatpush1.msra.mxu0 %v1121
    %1976 = vmatprep.subr.mxu0 0.0
    %1977 = vmatpush1.msra.mxu0 %v1120
    %1978 = vmatprep.subr.mxu0 0.0
    %1979 = vmatpush1.msra.mxu0 %v1119
    %1980 = vmatprep.subr.mxu0 0.0
    %1981 = vmatpush1.msra.mxu0 %v1118
    %1982 = vmatprep.subr.mxu0 0.0
    %1983 = vmatpush2.msra.mxu0 0.0
    %1984 = vmatprep.subr.mxu0 0.0
    %1985 = vmatpush2.msra.mxu0 0.0
    %1986 = vmatprep.subr.mxu0 0.0
    %1987 = vmatpush2.msra.mxu0 0.0
    %1988 = vmatprep.subr.mxu0 0.0
    %1989 = vmatpush2.msra.mxu0 0.0
    %1990 = vmatprep.subr.mxu0 0.0
    %1991 = vmatpush2.msra.mxu0 0.0
    %1992 = vmatprep.subr.mxu0 0.0
    %1993 = vmatpush2.msra.mxu0 0.0
    %1994 = vmatprep.subr.mxu0 0.0
    %1995 = vmatpush2.msra.mxu0 0.0
    %1996 = vmatprep.subr.mxu0 0.0
    %1997 = vmatpush2.msra.mxu0 0.0
    %1998 = vmatprep.subr.mxu0 0.0
    %1999 = vmatpush2.msra.mxu0 0.0
    %2000 = vmatprep.subr.mxu0 0.0
    %2001 = vmatpush2.msra.mxu0 0.0
    %2002 = vmatprep.subr.mxu0 0.0
    %2003 = vmatpush2.msra.mxu0 0.0
    %2004 = vmatprep.subr.mxu0 0.0
    %2005 = vmatpush2.msra.mxu0 0.0
    %2006 = vmatprep.subr.mxu0 0.0
    %2007 = vmatpush2.msra.mxu0 0.0
    %2008 = vmatprep.subr.mxu0 0.0
    %2009 = vmatpush2.msra.mxu0 0.0
    %2010 = vmatprep.subr.mxu0 0.0
    %2011 = vmatpush2.msra.mxu0 0.0
    %2012 = vmatprep.subr.mxu0 0.0
    %2013 = vmatpush2.msra.mxu0 0.0
    %2014 = vmatprep.mubr.f32.mxu0 0.0
    %2015 = vmatmul.mubr.f32.gmra.mxu0 %v1948
    %v2016 = vpop.f32.mrf.mxu0
    %v2017 = vadd.f32 0.0, %v2016
    %v2018 = vpop.f32.mrf.mxu0
    %2019 = vdwg.mxu0
    %v2021 = vrot.slane %v2017, 2
    %v2023 = vadd.f32 %v1209, %v2021
    %v2024 = vxor.u32 %v2023, 2147483648
    %v2025 = vmul.f32 %v2024, 1.442695
    %v2026 = vpow.pop %v2025
    %v2027 = vadd.f32 %v2026, 1.0
    %v2028 = vrcp.pop %v2027
    %v2029 = vmul.f32 1.0, %v2028
    %v2030 = vtanh.pop %v2023
    %v2032 = vrot.slane %v1937, 6
    %v2034 = vmul.f32 %v2029, %v2032
    %2036 = vrot.lane.b32.xlu0 %v2030, 32
    %v2037 = vpop.permute.xlu0 %2036
    %v2039 = vmul.f32 %v2029, %v2037
    %2041 = vrot.lane.b32.xlu0 %v2039, 32
    %v2042 = vpop.permute.xlu0 %2041
    %v2044 = vadd.f32 %v2034, %v2042
    %v2045 = vtanh.pop %v2044
    %2047 = vrot.lane.b32.xlu0 %v2045, 32
    %v2048 = vpop.permute.xlu0 %2047
    %v2050 = vmul.f32 %v2029, %v2048
    %2052 = vrot.lane.b32.xlu0 %v2050, 64
    %v2053 = vpop.permute.xlu0 %2052
    %s2055 = scalar_lea.vmem [#allocation3], 2
    %2056 = vst.msk [vmem:[%s2055 - $0x6] sm:$0xc0] %vm668, %v2053
    %2058 = vrot.lane.b32.xlu0 %v2044, 96
    %v2059 = vpop.permute.xlu0 %2058
    %s2061 = scalar_lea.vmem [#allocation5], 2
    %2062 = vst.msk [vmem:[%s2061 - $0x6] sm:$0xc0] %vm668, %v2059
    // Predicated region
    $region34: #{encoder_forward_pallas.1} parent=1 // pred_check
      _
    $region35: #{encoder_forward_pallas.1} parent=1 // pred_check_branch
      %2064 = sbr.rel (0) target = $region37
    $region36: #{encoder_forward_pallas.1} parent=1 // pred_region
      %s2066 = ssub.s32 64, 64
      %2067 = vsyncadd [#allocation4], %s2066
      %s2068 = sshll.u32 [#allocation3], 4
      %s2069 = int_to_ptr.vmem [resolvable:$true] %s2068
      %2074 = dma.vmem_to_hbm [thread:$0]  %s2069, 64, %s8, [#allocation4], 32, 32, 2
    $region37: #{encoder_forward_pallas.1} parent=1 // pred_fallthru
      _
    // Predicated region
    $region38: #{encoder_forward_pallas.1} parent=1 // pred_check
      _
    $region39: #{encoder_forward_pallas.1} parent=1 // pred_check_branch
      %2076 = sbr.rel (0) target = $region41
    $region40: #{encoder_forward_pallas.1} parent=1 // pred_region
      %s2078 = ssub.s32 64, 64
      %2079 = vsyncadd [#allocation6], %s2078
      %s2080 = sshll.u32 [#allocation5], 4
      %s2081 = int_to_ptr.vmem [resolvable:$true] %s2080
      %2086 = dma.vmem_to_hbm [thread:$0]  %s2081, 64, %s9, [#allocation6], 32, 32, 2
    $region41: #{encoder_forward_pallas.1} parent=1 // pred_fallthru
      _
    // Predicated region
    $region42: #{encoder_forward_pallas.1} parent=1 // pred_check
      _
    $region43: #{encoder_forward_pallas.1} parent=1 // pred_check_branch
      %2088 = sbr.rel (0) target = $region45
    $region44: #{encoder_forward_pallas.1} parent=1 // pred_region
      %2089 = dma.done [#allocation4], 64
    $region45: #{encoder_forward_pallas.1} parent=1 // pred_fallthru
      _
    // Predicated region
    $region46: #{encoder_forward_pallas.1} parent=1 // pred_check
      _
    $region47: #{encoder_forward_pallas.1} parent=1 // pred_check_branch
      %2091 = sbr.rel (0) target = $region49
    $region48: #{encoder_forward_pallas.1} parent=1 // pred_region
      %2092 = dma.done [#allocation6], 64
    $region49: #{encoder_forward_pallas.1} parent=1 // pred_fallthru
      _
    %2093 = vsyncpa [#allocation4], 1
    %2094 = vsyncpa [#allocation6], 1

</llo_original>
